<compile_context>
chip_gen: v7x
topology: tpu7x:2x2x1
jax: 0.10.0
libtpu: 0.0.40
codegen_flags: <defaults>
</compile_context>

<pallas_src>
import functools

import jax
import jax.numpy as jnp
from jax.experimental import pallas as pl
from jax.experimental.pallas import tpu as pltpu

# ----------------------------- configuration --------------------------------
NUM_IMAGES = 2
NUM_POINTS = 500            # per-image point count (deliberately not tile-aligned)
POSE_DIM = 12               # body_specs.pose_dim
DIM_COND_EMBED = 8          # self.dim_cond_embed
FEATURE_SIZE = 32           # opt.feature_vector_size
HIDDEN = 64                 # opt.dims = [64, 64]
D_OUT = 3                   # opt.d_out
IN0 = 3 + 3 + DIM_COND_EMBED + FEATURE_SIZE   # 46 = torch lin0 input dim
MAX_TM = 1024               # cap on the row tile
MIN_GRID_STEPS = 4          # keep both v7x TensorCores fed with >=2 tiles each


# ------------------------------- Pallas kernel -------------------------------
def _rendering_kernel(pts_ref, nrm_ref, feat_ref, bias0_ref,
                      w0p_ref, w0n_ref, w0f_ref, w1_ref, b1_ref, w2_ref, b2_ref,
                      out_ref):
    pts = pts_ref[0]          # (tm, 3)
    nrm = nrm_ref[0]          # (tm, 3)
    feat = feat_ref[0]        # (tm, FEATURE_SIZE)

    # layer 0: three partial dots (in-kernel equivalent of the torch concat)
    # plus the folded per-image bias (lin_pose(body_pose) @ W0_pose + b0), ReLU.
    h = jnp.dot(feat, w0f_ref[...], preferred_element_type=jnp.float32)
    h = h + jnp.dot(pts, w0p_ref[...], preferred_element_type=jnp.float32)
    h = h + jnp.dot(nrm, w0n_ref[...], preferred_element_type=jnp.float32)
    h = jnp.maximum(h + bias0_ref[0], 0.0)

    # layer 1
    h = jnp.dot(h, w1_ref[...], preferred_element_type=jnp.float32) + b1_ref[...]
    h = jnp.maximum(h, 0.0)

    # layer 2 (narrow 3-wide head) + sigmoid; masked partial store is cheap.
    h = jnp.dot(h, w2_ref[...], preferred_element_type=jnp.float32) + b2_ref[...]
    out_ref[0] = jax.nn.sigmoid(h)


# --------------------------------- wrapper -----------------------------------
@functools.partial(jax.jit, static_argnames=('render_mode',))
def rendering_net_forward(points, normals, body_pose, feature_vectors, params,
                          render_mode=''):
    """Pallas implementation of RenderingNet.forward (mode='pose').

    points:          (num_images, num_points, 3)
    normals:         (num_images * num_points, 3)
    body_pose:       (num_images, POSE_DIM)
    feature_vectors: (num_images * num_points, FEATURE_SIZE)
    """
    num_images = body_pose.shape[0]
    pts = points.reshape(num_images, -1, 3)
    num_points = pts.shape[1]
    n_rows = num_images * num_points
    nrm = normals.reshape(num_images, num_points, 3)
    feat = feature_vectors.reshape(num_images, num_points, FEATURE_SIZE)

    w0, b0 = params['w0'], params['b0']
    # Row slices of W0 matching the torch concat order [pts | normals | pose | feats].
    w0p = w0[0:3, :]
    w0n = w0[3:6, :]
    w0_pose = w0[6:6 + DIM_COND_EMBED, :]
    w0f = w0[6 + DIM_COND_EMBED:, :]

    # Fold lin_pose + layer-0 bias into a tiny per-image bias (fused by XLA under jit).
    pose_emb = body_pose @ params['wp'] + params['bp']            # (num_images, 8)
    if render_mode == 'env_obj':
        # torch zeroes the embedding AFTER lin_pose; equivalent here.
        pose_emb = jnp.zeros_like(pose_emb)
    bias0 = (pose_emb @ w0_pose + b0).reshape(num_images, 1, HIDDEN)

    # -------- pad-and-mask row tiling (no divisibility requirement) ----------
    target_tiles = max(1, -(-MIN_GRID_STEPS // num_images))       # tiles per image
    tm = -(-num_points // target_tiles)
    tm = -(-tm // 8) * 8                                          # multiple of 8
    tm = max(8, min(tm, MAX_TM))
    tiles_per_image = -(-num_points // tm)
    padded_points = tiles_per_image * tm

    def pad_rows(x):
        if padded_points == num_points:
            return x
        return jnp.pad(x, ((0, 0), (0, padded_points - num_points), (0, 0)))

    pts, nrm, feat = pad_rows(pts), pad_rows(nrm), pad_rows(feat)

    grid = (num_images, tiles_per_image)                          # tiles never straddle images
    row_spec = lambda c: pl.BlockSpec((1, tm, c), lambda im, t: (im, t, 0))
    const_spec = lambda r, c: pl.BlockSpec((r, c), lambda im, t: (0, 0))

    cost = pl.CostEstimate(
        flops=2 * n_rows * (IN0 * HIDDEN + HIDDEN * HIDDEN + HIDDEN * D_OUT),
        transcendentals=n_rows * D_OUT,
        bytes_accessed=n_rows * 4 * (3 + 3 + FEATURE_SIZE + D_OUT))

    out = pl.pallas_call(
        _rendering_kernel,
        out_shape=jax.ShapeDtypeStruct((num_images, padded_points, D_OUT),
                                       jnp.float32),
        grid=grid,
        in_specs=[
            row_spec(3),                                          # points
            row_spec(3),                                          # normals
            row_spec(FEATURE_SIZE),                               # feature_vectors
            pl.BlockSpec((1, 1, HIDDEN), lambda im, t: (im, 0, 0)),  # per-image bias0
            const_spec(3, HIDDEN),                                # W0[point rows]
            const_spec(3, HIDDEN),                                # W0[normal rows]
            const_spec(FEATURE_SIZE, HIDDEN),                     # W0[feature rows]
            const_spec(HIDDEN, HIDDEN),                           # W1
            const_spec(1, HIDDEN),                                # b1
            const_spec(HIDDEN, D_OUT),                            # W2 (narrow head)
            const_spec(1, D_OUT),                                 # b2
        ],
        out_specs=pl.BlockSpec((1, tm, D_OUT), lambda im, t: (im, t, 0)),
        compiler_params=pltpu.CompilerParams(
            dimension_semantics=("parallel", "parallel")),
        cost_estimate=cost,
    )(pts, nrm, feat, bias0, w0p, w0n, w0f,
      params['w1'], params['b1'], params['w2'], params['b2'])

    if padded_points != num_points:
        out = out[:, :num_points, :]
    return out.reshape(n_rows, D_OUT)


# ------------------------- deterministic parameter init ----------------------
def init_params(key):
    def linear(key, fan_in, fan_out):
        k1, k2 = jax.random.split(key)
        bound = 1.0 / jnp.sqrt(fan_in)
        w = jax.random.uniform(k1, (fan_in, fan_out), jnp.float32, -bound, bound)
        b = jax.random.uniform(k2, (1, fan_out), jnp.float32, -bound, bound)
        return w, b

    keys = jax.random.split(key, 4)
    wp, bp = linear(keys[0], POSE_DIM, DIM_COND_EMBED)   # lin_pose
    w0, b0 = linear(keys[1], IN0, HIDDEN)                # lin0
    w1, b1 = linear(keys[2], HIDDEN, HIDDEN)             # lin1
    w2, b2 = linear(keys[3], HIDDEN, D_OUT)              # lin2
    return dict(wp=wp, bp=bp, w0=w0, b0=b0, w1=w1, b1=b1, w2=w2, b2=b2)


# ------------------------------ pure-JAX reference ---------------------------
def reference_forward(points, normals, body_pose, feature_vectors, params,
                      render_mode=''):
    num_images = body_pose.shape[0]
    pts = points.reshape(num_images, -1, 3)
    num_points = pts.shape[1]
    n_rows = num_images * num_points
    pts = pts.reshape(n_rows, 3)
    pose_rep = jnp.broadcast_to(body_pose[:, None, :],
                                (num_images, num_points, POSE_DIM)
                                ).reshape(n_rows, POSE_DIM)
    pose_emb = pose_rep @ params['wp'] + params['bp']
    if render_mode == 'env_obj':
        pose_emb = jnp.zeros_like(pose_emb)
    x = jnp.concatenate([pts, normals, pose_emb, feature_vectors], axis=-1)
    x = jnp.maximum(x @ params['w0'] + params['b0'], 0.0)
    x = jnp.maximum(x @ params['w1'] + params['b1'], 0.0)
    x = x @ params['w2'] + params['b2']
    return jax.nn.sigmoid(x)


# ------------------------------------ main -----------------------------------
if __name__ == "__main__":
    key = jax.random.PRNGKey(0)
    k_p, k_n, k_bp, k_fv, k_params = jax.random.split(key, 5)

    points = jax.random.normal(k_p, (NUM_IMAGES, NUM_POINTS, 3), jnp.float32)
    normals = jax.random.normal(k_n, (NUM_IMAGES * NUM_POINTS, 3), jnp.float32)
    normals = normals / jnp.linalg.norm(normals, axis=-1, keepdims=True)
    body_pose = jax.random.normal(k_bp, (NUM_IMAGES, POSE_DIM), jnp.float32)
    feature_vectors = jax.random.normal(
        k_fv, (NUM_IMAGES * NUM_POINTS, FEATURE_SIZE), jnp.float32)

    params = init_params(k_params)

    out = rendering_net_forward(points, normals, body_pose, feature_vectors,
                                params)
    out = jax.block_until_ready(out)

    ref = reference_forward(points, normals, body_pose, feature_vectors, params)
    assert out.shape == (NUM_IMAGES * NUM_POINTS, D_OUT)
    assert jnp.allclose(out, ref, atol=1e-4, rtol=1e-4), "mismatch vs reference"

    print("KERNEL_OK")
</pallas_src>

<mosaic_0001>
module attributes {stable_mosaic.version = 11 : i64} {
  func.func @_rendering_kernel(%arg0: i32, %arg1: i32, %arg2: memref<1x256x3xf32, #tpu.memory_space<vmem>>, %arg3: memref<1x256x3xf32, #tpu.memory_space<vmem>>, %arg4: memref<1x256x32xf32, #tpu.memory_space<vmem>>, %arg5: memref<1x1x64xf32, #tpu.memory_space<vmem>>, %arg6: memref<3x64xf32, #tpu.memory_space<vmem>>, %arg7: memref<3x64xf32, #tpu.memory_space<vmem>>, %arg8: memref<32x64xf32, #tpu.memory_space<vmem>>, %arg9: memref<64x64xf32, #tpu.memory_space<vmem>>, %arg10: memref<1x64xf32, #tpu.memory_space<vmem>>, %arg11: memref<64x3xf32, #tpu.memory_space<vmem>>, %arg12: memref<1x3xf32, #tpu.memory_space<vmem>>, %arg13: memref<1x256x3xf32, #tpu.memory_space<vmem>>) attributes {dimension_semantics = [#tpu.dimension_semantics<parallel>, #tpu.dimension_semantics<parallel>], iteration_bounds = array<i64: 2, 2>, scalar_prefetch = 0 : i64, scratch_operands = 0 : i64, tpu.core_type = #tpu.core_type<tc>, window_params = [{transform_indices = @transform_0, window_bounds = array<i64: 1, 256, 3>}, {transform_indices = @transform_1, window_bounds = array<i64: 1, 256, 3>}, {transform_indices = @transform_2, window_bounds = array<i64: 1, 256, 32>}, {transform_indices = @transform_3, window_bounds = array<i64: 1, 1, 64>}, {pipeline_mode = #tpu.pipeline_mode<synchronous>, transform_indices = @transform_4, window_bounds = array<i64: 3, 64>}, {pipeline_mode = #tpu.pipeline_mode<synchronous>, transform_indices = @transform_5, window_bounds = array<i64: 3, 64>}, {pipeline_mode = #tpu.pipeline_mode<synchronous>, transform_indices = @transform_6, window_bounds = array<i64: 32, 64>}, {pipeline_mode = #tpu.pipeline_mode<synchronous>, transform_indices = @transform_7, window_bounds = array<i64: 64, 64>}, {pipeline_mode = #tpu.pipeline_mode<synchronous>, transform_indices = @transform_8, window_bounds = array<i64: 1, 64>}, {pipeline_mode = #tpu.pipeline_mode<synchronous>, transform_indices = @transform_9, window_bounds = array<i64: 64, 3>}, {pipeline_mode = #tpu.pipeline_mode<synchronous>, transform_indices = @transform_10, window_bounds = array<i64: 1, 3>}, {transform_indices = @transform_11, window_bounds = array<i64: 1, 256, 3>}]} {
    %c0 = arith.constant 0 : index
    %c0_0 = arith.constant 0 : index
    %c0_1 = arith.constant 0 : index
    %0 = vector.load %arg2[%c0, %c0_0, %c0_1] : memref<1x256x3xf32, #tpu.memory_space<vmem>>, vector<1x256x3xf32>
    %1 = vector.shape_cast %0 : vector<1x256x3xf32> to vector<256x3xf32>
    %c0_2 = arith.constant 0 : index
    %c0_3 = arith.constant 0 : index
    %c0_4 = arith.constant 0 : index
    %2 = vector.load %arg3[%c0_2, %c0_3, %c0_4] : memref<1x256x3xf32, #tpu.memory_space<vmem>>, vector<1x256x3xf32>
    %3 = vector.shape_cast %2 : vector<1x256x3xf32> to vector<256x3xf32>
    %c0_5 = arith.constant 0 : index
    %c0_6 = arith.constant 0 : index
    %c0_7 = arith.constant 0 : index
    %4 = vector.load %arg4[%c0_5, %c0_6, %c0_7] : memref<1x256x32xf32, #tpu.memory_space<vmem>>, vector<1x256x32xf32>
    %5 = vector.shape_cast %4 : vector<1x256x32xf32> to vector<256x32xf32>
    %c0_8 = arith.constant 0 : index
    %c0_9 = arith.constant 0 : index
    %6 = vector.load %arg8[%c0_8, %c0_9] : memref<32x64xf32, #tpu.memory_space<vmem>>, vector<32x64xf32>
    %cst = arith.constant dense<0.000000e+00> : vector<256x64xf32>
    %7 = tpu.matmul %5, %6, %cst {dimension_numbers = #tpu.dot_dimension_numbers<[1], [0], [0], [1], [0, 0, 1, 1], [], []>} : vector<256x32xf32>, vector<32x64xf32>, vector<256x64xf32> -> vector<256x64xf32>
    %c0_10 = arith.constant 0 : index
    %c0_11 = arith.constant 0 : index
    %8 = vector.load %arg6[%c0_10, %c0_11] : memref<3x64xf32, #tpu.memory_space<vmem>>, vector<3x64xf32>
    %cst_12 = arith.constant dense<0.000000e+00> : vector<256x64xf32>
    %9 = tpu.matmul %1, %8, %cst_12 {dimension_numbers = #tpu.dot_dimension_numbers<[1], [0], [0], [1], [0, 0, 1, 1], [], []>} : vector<256x3xf32>, vector<3x64xf32>, vector<256x64xf32> -> vector<256x64xf32>
    %10 = arith.addf %7, %9 : vector<256x64xf32>
    %c0_13 = arith.constant 0 : index
    %c0_14 = arith.constant 0 : index
    %11 = vector.load %arg7[%c0_13, %c0_14] : memref<3x64xf32, #tpu.memory_space<vmem>>, vector<3x64xf32>
    %cst_15 = arith.constant dense<0.000000e+00> : vector<256x64xf32>
    %12 = tpu.matmul %3, %11, %cst_15 {dimension_numbers = #tpu.dot_dimension_numbers<[1], [0], [0], [1], [0, 0, 1, 1], [], []>} : vector<256x3xf32>, vector<3x64xf32>, vector<256x64xf32> -> vector<256x64xf32>
    %13 = arith.addf %10, %12 : vector<256x64xf32>
    %c0_16 = arith.constant 0 : index
    %c0_17 = arith.constant 0 : index
    %c0_18 = arith.constant 0 : index
    %14 = vector.load %arg5[%c0_16, %c0_17, %c0_18] : memref<1x1x64xf32, #tpu.memory_space<vmem>>, vector<1x1x64xf32>
    %15 = vector.shape_cast %14 : vector<1x1x64xf32> to vector<1x64xf32>
    %16 = vector.broadcast %15 : vector<1x64xf32> to vector<256x64xf32>
    %17 = arith.addf %13, %16 : vector<256x64xf32>
    %cst_19 = arith.constant 0.000000e+00 : f32
    %18 = vector.broadcast %cst_19 : f32 to vector<256x64xf32>
    %19 = arith.maximumf %17, %18 : vector<256x64xf32>
    %c0_20 = arith.constant 0 : index
    %c0_21 = arith.constant 0 : index
    %20 = vector.load %arg9[%c0_20, %c0_21] : memref<64x64xf32, #tpu.memory_space<vmem>>, vector<64x64xf32>
    %cst_22 = arith.constant dense<0.000000e+00> : vector<256x64xf32>
    %21 = tpu.matmul %19, %20, %cst_22 {dimension_numbers = #tpu.dot_dimension_numbers<[1], [0], [0], [1], [0, 0, 1, 1], [], []>} : vector<256x64xf32>, vector<64x64xf32>, vector<256x64xf32> -> vector<256x64xf32>
    %c0_23 = arith.constant 0 : index
    %c0_24 = arith.constant 0 : index
    %22 = vector.load %arg10[%c0_23, %c0_24] : memref<1x64xf32, #tpu.memory_space<vmem>>, vector<1x64xf32>
    %23 = vector.broadcast %22 : vector<1x64xf32> to vector<256x64xf32>
    %24 = arith.addf %21, %23 : vector<256x64xf32>
    %cst_25 = arith.constant 0.000000e+00 : f32
    %25 = vector.broadcast %cst_25 : f32 to vector<256x64xf32>
    %26 = arith.maximumf %24, %25 : vector<256x64xf32>
    %c0_26 = arith.constant 0 : index
    %c0_27 = arith.constant 0 : index
    %27 = vector.load %arg11[%c0_26, %c0_27] : memref<64x3xf32, #tpu.memory_space<vmem>>, vector<64x3xf32>
    %cst_28 = arith.constant dense<0.000000e+00> : vector<256x3xf32>
    %28 = tpu.matmul %26, %27, %cst_28 {dimension_numbers = #tpu.dot_dimension_numbers<[1], [0], [0], [1], [0, 0, 1, 1], [], []>} : vector<256x64xf32>, vector<64x3xf32>, vector<256x3xf32> -> vector<256x3xf32>
    %c0_29 = arith.constant 0 : index
    %c0_30 = arith.constant 0 : index
    %29 = vector.load %arg12[%c0_29, %c0_30] : memref<1x3xf32, #tpu.memory_space<vmem>>, vector<1x3xf32>
    %30 = vector.broadcast %29 : vector<1x3xf32> to vector<256x3xf32>
    %31 = arith.addf %28, %30 : vector<256x3xf32>
    %32 = arith.negf %31 : vector<256x3xf32>
    %33 = math.exp %32 : vector<256x3xf32>
    %cst_31 = arith.constant 1.000000e+00 : f32
    %34 = vector.broadcast %cst_31 : f32 to vector<256x3xf32>
    %35 = arith.addf %34, %33 : vector<256x3xf32>
    %36 = arith.divf %34, %35 : vector<256x3xf32>
    %c0_32 = arith.constant 0 : index
    %c0_33 = arith.constant 0 : index
    %c0_34 = arith.constant 0 : index
    %37 = vector.load %arg13[%c0_32, %c0_33, %c0_34] : memref<1x256x3xf32, #tpu.memory_space<vmem>>, vector<1x256x3xf32>
    %38 = vector.shape_cast %37 : vector<1x256x3xf32> to vector<256x3xf32>
    %39 = vector.shape_cast %36 : vector<256x3xf32> to vector<1x256x3xf32>
    tpu.vector_store %arg13[%c0_32, %c0_33, %c0_34], %39 {strides = array<i32>} : memref<1x256x3xf32, #tpu.memory_space<vmem>>, vector<1x256x3xf32>,
    return
  }
  func.func @transform_0(%arg0: i32, %arg1: i32) -> (i32, i32, i32) {
    %c0_i32 = arith.constant 0 : i32
    %c0_i32_0 = arith.constant 0 : i32
    return %arg0, %arg1, %c0_i32 : i32, i32, i32
  }
  func.func @transform_1(%arg0: i32, %arg1: i32) -> (i32, i32, i32) {
    %c0_i32 = arith.constant 0 : i32
    %c0_i32_0 = arith.constant 0 : i32
    return %arg0, %arg1, %c0_i32 : i32, i32, i32
  }
  func.func @transform_2(%arg0: i32, %arg1: i32) -> (i32, i32, i32) {
    %c0_i32 = arith.constant 0 : i32
    %c0_i32_0 = arith.constant 0 : i32
    return %arg0, %arg1, %c0_i32 : i32, i32, i32
  }
  func.func @transform_3(%arg0: i32, %arg1: i32) -> (i32, i32, i32) {
    %c0_i32 = arith.constant 0 : i32
    %c0_i32_0 = arith.constant 0 : i32
    %c0_i32_1 = arith.constant 0 : i32
    return %arg0, %c0_i32, %c0_i32_0 : i32, i32, i32
  }
  func.func @transform_4(%arg0: i32, %arg1: i32) -> (i32, i32) {
    %c0_i32 = arith.constant 0 : i32
    %c0_i32_0 = arith.constant 0 : i32
    %c0_i32_1 = arith.constant 0 : i32
    return %c0_i32, %c0_i32_0 : i32, i32
  }
  func.func @transform_5(%arg0: i32, %arg1: i32) -> (i32, i32) {
    %c0_i32 = arith.constant 0 : i32
    %c0_i32_0 = arith.constant 0 : i32
    %c0_i32_1 = arith.constant 0 : i32
    return %c0_i32, %c0_i32_0 : i32, i32
  }
  func.func @transform_6(%arg0: i32, %arg1: i32) -> (i32, i32) {
    %c0_i32 = arith.constant 0 : i32
    %c0_i32_0 = arith.constant 0 : i32
    %c0_i32_1 = arith.constant 0 : i32
    return %c0_i32, %c0_i32_0 : i32, i32
  }
  func.func @transform_7(%arg0: i32, %arg1: i32) -> (i32, i32) {
    %c0_i32 = arith.constant 0 : i32
    %c0_i32_0 = arith.constant 0 : i32
    %c0_i32_1 = arith.constant 0 : i32
    return %c0_i32, %c0_i32_0 : i32, i32
  }
  func.func @transform_8(%arg0: i32, %arg1: i32) -> (i32, i32) {
    %c0_i32 = arith.constant 0 : i32
    %c0_i32_0 = arith.constant 0 : i32
    %c0_i32_1 = arith.constant 0 : i32
    return %c0_i32, %c0_i32_0 : i32, i32
  }
  func.func @transform_9(%arg0: i32, %arg1: i32) -> (i32, i32) {
    %c0_i32 = arith.constant 0 : i32
    %c0_i32_0 = arith.constant 0 : i32
    %c0_i32_1 = arith.constant 0 : i32
    return %c0_i32, %c0_i32_0 : i32, i32
  }
  func.func @transform_10(%arg0: i32, %arg1: i32) -> (i32, i32) {
    %c0_i32 = arith.constant 0 : i32
    %c0_i32_0 = arith.constant 0 : i32
    %c0_i32_1 = arith.constant 0 : i32
    return %c0_i32, %c0_i32_0 : i32, i32
  }
  func.func @transform_11(%arg0: i32, %arg1: i32) -> (i32, i32, i32) {
    %c0_i32 = arith.constant 0 : i32
    %c0_i32_0 = arith.constant 0 : i32
    return %arg0, %arg1, %c0_i32 : i32, i32, i32
  }
}

</mosaic_0001>

<llo_original>
// kernel: rendering_net_forward.1
$region0: #{rendering_net_forward.1}
  #allocation0 [shape = 'u32[]', space=smem, size = 0x4, offset = 0x4, fixed_abs, tag = 'smem constant byte address 0x4 - core index']
  #allocation1 [shape = 'u32[144,128]{1,0:T(1,128)}', space=vmem, size = 0x12000, scoped, tag = 'internal scratch']
  %s0 = inlined_call_operand.vmem [shape: f32[2,512,3], index: 0, kind: input, shape index: {}]
  %s1 = inlined_call_operand.vmem [shape: f32[2,512,3], index: 1, kind: input, shape index: {}]
  %s2 = inlined_call_operand.vmem [shape: f32[2,512,32], index: 2, kind: input, shape index: {}]
  %s3 = inlined_call_operand.vmem [shape: f32[2,1,64], index: 3, kind: input, shape index: {}]
  %s4 = inlined_call_operand.vmem [shape: f32[3,64], index: 4, kind: input, shape index: {}]
  %s5 = inlined_call_operand.vmem [shape: f32[3,64], index: 5, kind: input, shape index: {}]
  %s6 = inlined_call_operand.vmem [shape: f32[32,64], index: 6, kind: input, shape index: {}]
  %s7 = inlined_call_operand.vmem [shape: f32[64,64], index: 7, kind: input, shape index: {}]
  %s8 = inlined_call_operand.vmem [shape: f32[1,64], index: 8, kind: input, shape index: {}]
  %s9 = inlined_call_operand.vmem [shape: f32[64,3], index: 9, kind: input, shape index: {}]
  %s10 = inlined_call_operand.vmem [shape: f32[1,3], index: 10, kind: input, shape index: {}]
  %s11 = inlined_call_operand.vmem [shape: f32[2,512,3], index: 11, kind: output, shape index: {}]
  %s12 = sld [smem:[#allocation0]]
  $region77: #{rendering_net_forward.1} parent=0
    _
  %s14 = ssub.s32 1, %s12
  %s15 = scalar_select 0, %s14, %s12
  loop: start=0, step=1, limit=6
  $region2: #{rendering_net_forward.1} parent=0 // loop_pre_header
    _
  $region3: #{rendering_net_forward.1} parent=0 // loop_header
    %s17 = sphi 0, %s21
    %p18 = scmp.ge.s32.totalorder %s17, 6
    %s24 = sphi 0, %s36
    %s25 = sphi 0, %s32
    %s26 = sphi 0, %s24
    %s27 = sphi 0, %s25
    %s28 = sphi 0, %s26
    %s29 = sphi 0, %s27
    %s41 = sphi 0, %s43
    %s44 = sphi 0, %s41
    %s45 = sphi 0, %s44
    %s61 = sphi 0, %s45
    %s69 = sphi 0, %s71
    %s72 = sphi 0, %s69
    %s73 = sphi 0, %s72
    %s89 = sphi 0, %s73
    %s97 = sphi 0, %s99
    %s100 = sphi 0, %s97
    %s101 = sphi 0, %s100
    %s117 = sphi 0, %s101
    %s123 = sphi 0, %s125
    %s126 = sphi 0, %s123
    %s127 = sphi 0, %s126
    %s143 = sphi 0, %s127
    %s147 = sphi 0, %s147
    %s149 = sphi 0, %s147
    %s150 = sphi 0, %s149
    %s164 = sphi 0, %s150
    %s168 = sphi 0, %s168
    %s170 = sphi 0, %s168
    %s171 = sphi 0, %s170
    %s185 = sphi 0, %s171
    %s189 = sphi 0, %s189
    %s191 = sphi 0, %s189
    %s192 = sphi 0, %s191
    %s206 = sphi 0, %s192
    %s210 = sphi 0, %s210
    %s212 = sphi 0, %s210
    %s213 = sphi 0, %s212
    %s227 = sphi 0, %s213
    %s231 = sphi 0, %s231
    %s233 = sphi 0, %s231
    %s234 = sphi 0, %s233
    %s248 = sphi 0, %s234
    %s252 = sphi 0, %s252
    %s254 = sphi 0, %s252
    %s255 = sphi 0, %s254
    %s269 = sphi 0, %s255
    %s273 = sphi 0, %s273
    %s275 = sphi 0, %s273
    %s276 = sphi 0, %s275
    %s290 = sphi 0, %s276
    %s298 = sphi 0, %s300
    %s301 = sphi 0, %s298
    %s302 = sphi 0, %s301
    %s318 = sphi 0, %s302
  $region4: #{rendering_net_forward.1} parent=0 // loop_header_branch
    %20 = sbr.rel (%p18) target = $region8
  $region5: #{rendering_net_forward.1} parent=0 // loop_body
    %s22 = ssub.s32 %s17, 1
    %s23 = ssub.s32 %s17, 2
    %s30 = sadd.s32 1, %s25
    %p31 = scmp.ge.s32.totalorder %s30, 2
    %s32 = scalar_select %p31, 0, %s30
    %s33 = sadd.s32 1, %s24
    %s34 = scalar_select %p31, %s33, %s24
    %p35 = scmp.ge.s32.totalorder %s34, 2
    %s36 = scalar_select %p35, 0, %s34
    %s37 = ssub.s32 %s24, %s36
    %s38 = ssub.s32 %s25, %s32
    %s39 = sor.u32 %s37, %s38
    %p40 = scmp.eq.s32.totalorder %s39, 0
    %s42 = sadd.s32 %s41, 1
    %s43 = scalar_select %p40, %s41, %s42
    %p46 = pneg %p40
    %p47 = scmp.eq.s32.totalorder %s17, 3
    %p48 = por %p46, %p47
    %p49 = scmp.ne.s32.totalorder %s41, %s44
    %p50 = scmp.eq.s32.totalorder %s17, 0
    %p51 = por %p49, %p50
    %p52 = scmp.ne.s32.totalorder %s41, %s44
    %p53 = scmp.eq.s32.totalorder %s22, 3
    %p54 = por %p52, %p53
    %p55 = scmp.ne.s32.totalorder %s44, %s45
    %p56 = scmp.eq.s32.totalorder %s22, 0
    %p57 = por %p55, %p56
    %p58 = scmp.ne.s32.totalorder %s44, %s45
    %p59 = scmp.eq.s32.totalorder %s23, 3
    %p60 = por %p58, %p59
    %p62 = scmp.ne.s32.totalorder %s45, %s61
    %p63 = scmp.eq.s32.totalorder %s23, 0
    %p64 = por %p62, %p63
    %s65 = ssub.s32 %s24, %s36
    %s66 = ssub.s32 %s25, %s32
    %s67 = sor.u32 %s65, %s66
    %p68 = scmp.eq.s32.totalorder %s67, 0
    %s70 = sadd.s32 %s69, 1
    %s71 = scalar_select %p68, %s69, %s70
    %p74 = pneg %p68
    %p75 = scmp.eq.s32.totalorder %s17, 3
    %p76 = por %p74, %p75
    %p77 = scmp.ne.s32.totalorder %s69, %s72
    %p78 = scmp.eq.s32.totalorder %s17, 0
    %p79 = por %p77, %p78
    %p80 = scmp.ne.s32.totalorder %s69, %s72
    %p81 = scmp.eq.s32.totalorder %s22, 3
    %p82 = por %p80, %p81
    %p83 = scmp.ne.s32.totalorder %s72, %s73
    %p84 = scmp.eq.s32.totalorder %s22, 0
    %p85 = por %p83, %p84
    %p86 = scmp.ne.s32.totalorder %s72, %s73
    %p87 = scmp.eq.s32.totalorder %s23, 3
    %p88 = por %p86, %p87
    %p90 = scmp.ne.s32.totalorder %s73, %s89
    %p91 = scmp.eq.s32.totalorder %s23, 0
    %p92 = por %p90, %p91
    %s93 = ssub.s32 %s24, %s36
    %s94 = ssub.s32 %s25, %s32
    %s95 = sor.u32 %s93, %s94
    %p96 = scmp.eq.s32.totalorder %s95, 0
    %s98 = sadd.s32 %s97, 1
    %s99 = scalar_select %p96, %s97, %s98
    %p102 = pneg %p96
    %p103 = scmp.eq.s32.totalorder %s17, 3
    %p104 = por %p102, %p103
    %p105 = scmp.ne.s32.totalorder %s97, %s100
    %p106 = scmp.eq.s32.totalorder %s17, 0
    %p107 = por %p105, %p106
    %p108 = scmp.ne.s32.totalorder %s97, %s100
    %p109 = scmp.eq.s32.totalorder %s22, 3
    %p110 = por %p108, %p109
    %p111 = scmp.ne.s32.totalorder %s100, %s101
    %p112 = scmp.eq.s32.totalorder %s22, 0
    %p113 = por %p111, %p112
    %p114 = scmp.ne.s32.totalorder %s100, %s101
    %p115 = scmp.eq.s32.totalorder %s23, 3
    %p116 = por %p114, %p115
    %p118 = scmp.ne.s32.totalorder %s101, %s117
    %p119 = scmp.eq.s32.totalorder %s23, 0
    %p120 = por %p118, %p119
    %s121 = ssub.s32 %s24, %s36
    %p122 = scmp.eq.s32.totalorder %s121, 0
    %s124 = sadd.s32 %s123, 1
    %s125 = scalar_select %p122, %s123, %s124
    %p128 = pneg %p122
    %p129 = scmp.eq.s32.totalorder %s17, 3
    %p130 = por %p128, %p129
    %p131 = scmp.ne.s32.totalorder %s123, %s126
    %p132 = scmp.eq.s32.totalorder %s17, 0
    %p133 = por %p131, %p132
    %p134 = scmp.ne.s32.totalorder %s123, %s126
    %p135 = scmp.eq.s32.totalorder %s22, 3
    %p136 = por %p134, %p135
    %p137 = scmp.ne.s32.totalorder %s126, %s127
    %p138 = scmp.eq.s32.totalorder %s22, 0
    %p139 = por %p137, %p138
    %p140 = scmp.ne.s32.totalorder %s126, %s127
    %p141 = scmp.eq.s32.totalorder %s23, 3
    %p142 = por %p140, %p141
    %p144 = scmp.ne.s32.totalorder %s127, %s143
    %p145 = scmp.eq.s32.totalorder %s23, 0
    %p146 = por %p144, %p145
    %s148 = sadd.s32 %s147, 1
    %p151 = scmp.eq.s32.totalorder %s17, 3
    %p152 = scmp.ne.s32.totalorder %s147, %s149
    %p153 = scmp.eq.s32.totalorder %s17, 0
    %p154 = por %p152, %p153
    %p155 = scmp.ne.s32.totalorder %s147, %s149
    %p156 = scmp.eq.s32.totalorder %s22, 3
    %p157 = por %p155, %p156
    %p158 = scmp.ne.s32.totalorder %s149, %s150
    %p159 = scmp.eq.s32.totalorder %s22, 0
    %p160 = por %p158, %p159
    %p161 = scmp.ne.s32.totalorder %s149, %s150
    %p162 = scmp.eq.s32.totalorder %s23, 3
    %p163 = por %p161, %p162
    %p165 = scmp.ne.s32.totalorder %s150, %s164
    %p166 = scmp.eq.s32.totalorder %s23, 0
    %p167 = por %p165, %p166
    %s169 = sadd.s32 %s168, 1
    %p172 = scmp.eq.s32.totalorder %s17, 3
    %p173 = scmp.ne.s32.totalorder %s168, %s170
    %p174 = scmp.eq.s32.totalorder %s17, 0
    %p175 = por %p173, %p174
    %p176 = scmp.ne.s32.totalorder %s168, %s170
    %p177 = scmp.eq.s32.totalorder %s22, 3
    %p178 = por %p176, %p177
    %p179 = scmp.ne.s32.totalorder %s170, %s171
    %p180 = scmp.eq.s32.totalorder %s22, 0
    %p181 = por %p179, %p180
    %p182 = scmp.ne.s32.totalorder %s170, %s171
    %p183 = scmp.eq.s32.totalorder %s23, 3
    %p184 = por %p182, %p183
    %p186 = scmp.ne.s32.totalorder %s171, %s185
    %p187 = scmp.eq.s32.totalorder %s23, 0
    %p188 = por %p186, %p187
    %s190 = sadd.s32 %s189, 1
    %p193 = scmp.eq.s32.totalorder %s17, 3
    %p194 = scmp.ne.s32.totalorder %s189, %s191
    %p195 = scmp.eq.s32.totalorder %s17, 0
    %p196 = por %p194, %p195
    %p197 = scmp.ne.s32.totalorder %s189, %s191
    %p198 = scmp.eq.s32.totalorder %s22, 3
    %p199 = por %p197, %p198
    %p200 = scmp.ne.s32.totalorder %s191, %s192
    %p201 = scmp.eq.s32.totalorder %s22, 0
    %p202 = por %p200, %p201
    %p203 = scmp.ne.s32.totalorder %s191, %s192
    %p204 = scmp.eq.s32.totalorder %s23, 3
    %p205 = por %p203, %p204
    %p207 = scmp.ne.s32.totalorder %s192, %s206
    %p208 = scmp.eq.s32.totalorder %s23, 0
    %p209 = por %p207, %p208
    %s211 = sadd.s32 %s210, 1
    %p214 = scmp.eq.s32.totalorder %s17, 3
    %p215 = scmp.ne.s32.totalorder %s210, %s212
    %p216 = scmp.eq.s32.totalorder %s17, 0
    %p217 = por %p215, %p216
    %p218 = scmp.ne.s32.totalorder %s210, %s212
    %p219 = scmp.eq.s32.totalorder %s22, 3
    %p220 = por %p218, %p219
    %p221 = scmp.ne.s32.totalorder %s212, %s213
    %p222 = scmp.eq.s32.totalorder %s22, 0
    %p223 = por %p221, %p222
    %p224 = scmp.ne.s32.totalorder %s212, %s213
    %p225 = scmp.eq.s32.totalorder %s23, 3
    %p226 = por %p224, %p225
    %p228 = scmp.ne.s32.totalorder %s213, %s227
    %p229 = scmp.eq.s32.totalorder %s23, 0
    %p230 = por %p228, %p229
    %s232 = sadd.s32 %s231, 1
    %p235 = scmp.eq.s32.totalorder %s17, 3
    %p236 = scmp.ne.s32.totalorder %s231, %s233
    %p237 = scmp.eq.s32.totalorder %s17, 0
    %p238 = por %p236, %p237
    %p239 = scmp.ne.s32.totalorder %s231, %s233
    %p240 = scmp.eq.s32.totalorder %s22, 3
    %p241 = por %p239, %p240
    %p242 = scmp.ne.s32.totalorder %s233, %s234
    %p243 = scmp.eq.s32.totalorder %s22, 0
    %p244 = por %p242, %p243
    %p245 = scmp.ne.s32.totalorder %s233, %s234
    %p246 = scmp.eq.s32.totalorder %s23, 3
    %p247 = por %p245, %p246
    %p249 = scmp.ne.s32.totalorder %s234, %s248
    %p250 = scmp.eq.s32.totalorder %s23, 0
    %p251 = por %p249, %p250
    %s253 = sadd.s32 %s252, 1
    %p256 = scmp.eq.s32.totalorder %s17, 3
    %p257 = scmp.ne.s32.totalorder %s252, %s254
    %p258 = scmp.eq.s32.totalorder %s17, 0
    %p259 = por %p257, %p258
    %p260 = scmp.ne.s32.totalorder %s252, %s254
    %p261 = scmp.eq.s32.totalorder %s22, 3
    %p262 = por %p260, %p261
    %p263 = scmp.ne.s32.totalorder %s254, %s255
    %p264 = scmp.eq.s32.totalorder %s22, 0
    %p265 = por %p263, %p264
    %p266 = scmp.ne.s32.totalorder %s254, %s255
    %p267 = scmp.eq.s32.totalorder %s23, 3
    %p268 = por %p266, %p267
    %p270 = scmp.ne.s32.totalorder %s255, %s269
    %p271 = scmp.eq.s32.totalorder %s23, 0
    %p272 = por %p270, %p271
    %s274 = sadd.s32 %s273, 1
    %p277 = scmp.eq.s32.totalorder %s17, 3
    %p278 = scmp.ne.s32.totalorder %s273, %s275
    %p279 = scmp.eq.s32.totalorder %s17, 0
    %p280 = por %p278, %p279
    %p281 = scmp.ne.s32.totalorder %s273, %s275
    %p282 = scmp.eq.s32.totalorder %s22, 3
    %p283 = por %p281, %p282
    %p284 = scmp.ne.s32.totalorder %s275, %s276
    %p285 = scmp.eq.s32.totalorder %s22, 0
    %p286 = por %p284, %p285
    %p287 = scmp.ne.s32.totalorder %s275, %s276
    %p288 = scmp.eq.s32.totalorder %s23, 3
    %p289 = por %p287, %p288
    %p291 = scmp.ne.s32.totalorder %s276, %s290
    %p292 = scmp.eq.s32.totalorder %s23, 0
    %p293 = por %p291, %p292
    %s294 = ssub.s32 %s24, %s36
    %s295 = ssub.s32 %s25, %s32
    %s296 = sor.u32 %s294, %s295
    %p297 = scmp.eq.s32.totalorder %s296, 0
    %s299 = sadd.s32 %s298, 1
    %s300 = scalar_select %p297, %s298, %s299
    %p303 = pneg %p297
    %p304 = scmp.eq.s32.totalorder %s17, 3
    %p305 = por %p303, %p304
    %p306 = scmp.ne.s32.totalorder %s298, %s301
    %p307 = scmp.eq.s32.totalorder %s17, 0
    %p308 = por %p306, %p307
    %p309 = scmp.ne.s32.totalorder %s298, %s301
    %p310 = scmp.eq.s32.totalorder %s22, 3
    %p311 = por %p309, %p310
    %p312 = scmp.ne.s32.totalorder %s301, %s302
    %p313 = scmp.eq.s32.totalorder %s22, 0
    %p314 = por %p312, %p313
    %p315 = scmp.ne.s32.totalorder %s301, %s302
    %p316 = scmp.eq.s32.totalorder %s23, 3
    %p317 = por %p315, %p316
    %p319 = scmp.ne.s32.totalorder %s302, %s318
    %p320 = scmp.eq.s32.totalorder %s23, 0
    %p321 = por %p319, %p320
    %p322 = scmp.le.s32.totalorder 1, %s17
    %p323 = scmp.lt.s32.totalorder %s17, 5
    %p324 = pnand %p322, %p323
    %p325 = pneg %p324
    // Predicated region
    $region9: #{rendering_net_forward.1} parent=5 // pred_check
      _
    $region10: #{rendering_net_forward.1} parent=5 // pred_check_branch
      %327 = sbr.rel (%p324) target = $region12
    $region11: #{rendering_net_forward.1} parent=5 // pred_region
      %s328 = ssub.s32 %s17, 1
      // Predicated region
      $region13: #{rendering_net_forward.1} parent=11 // pred_check
        %p329 = pneg %p160
      $region14: #{rendering_net_forward.1} parent=11 // pred_check_branch
        %331 = sbr.rel (%p329) target = $region16
      $region15: #{rendering_net_forward.1} parent=11 // pred_region
        _
      $region16: #{rendering_net_forward.1} parent=11 // pred_fallthru
        _
      // Predicated region
      $region17: #{rendering_net_forward.1} parent=11 // pred_check
        %p332 = pneg %p181
      $region18: #{rendering_net_forward.1} parent=11 // pred_check_branch
        %334 = sbr.rel (%p332) target = $region20
      $region19: #{rendering_net_forward.1} parent=11 // pred_region
        _
      $region20: #{rendering_net_forward.1} parent=11 // pred_fallthru
        _
      // Predicated region
      $region21: #{rendering_net_forward.1} parent=11 // pred_check
        %p335 = pneg %p202
      $region22: #{rendering_net_forward.1} parent=11 // pred_check_branch
        %337 = sbr.rel (%p335) target = $region24
      $region23: #{rendering_net_forward.1} parent=11 // pred_region
        _
      $region24: #{rendering_net_forward.1} parent=11 // pred_fallthru
        _
      // Predicated region
      $region25: #{rendering_net_forward.1} parent=11 // pred_check
        %p338 = pneg %p223
      $region26: #{rendering_net_forward.1} parent=11 // pred_check_branch
        %340 = sbr.rel (%p338) target = $region28
      $region27: #{rendering_net_forward.1} parent=11 // pred_region
        _
      $region28: #{rendering_net_forward.1} parent=11 // pred_fallthru
        _
      // Predicated region
      $region29: #{rendering_net_forward.1} parent=11 // pred_check
        %p341 = pneg %p244
      $region30: #{rendering_net_forward.1} parent=11 // pred_check_branch
        %343 = sbr.rel (%p341) target = $region32
      $region31: #{rendering_net_forward.1} parent=11 // pred_region
        _
      $region32: #{rendering_net_forward.1} parent=11 // pred_fallthru
        _
      // Predicated region
      $region33: #{rendering_net_forward.1} parent=11 // pred_check
        %p344 = pneg %p265
      $region34: #{rendering_net_forward.1} parent=11 // pred_check_branch
        %346 = sbr.rel (%p344) target = $region36
      $region35: #{rendering_net_forward.1} parent=11 // pred_region
        _
      $region36: #{rendering_net_forward.1} parent=11 // pred_fallthru
        _
      // Predicated region
      $region37: #{rendering_net_forward.1} parent=11 // pred_check
        %p347 = pneg %p286
      $region38: #{rendering_net_forward.1} parent=11 // pred_check_branch
        %349 = sbr.rel (%p347) target = $region40
      $region39: #{rendering_net_forward.1} parent=11 // pred_region
        _
      $region40: #{rendering_net_forward.1} parent=11 // pred_fallthru
        _
    $region12: #{rendering_net_forward.1} parent=5 // pred_fallthru
      _
    %p350 = scmp.lt.s32.totalorder %s17, 4
    // Predicated region
    $region41: #{rendering_net_forward.1} parent=5 // pred_check
      %p351 = pneg %p350
    $region42: #{rendering_net_forward.1} parent=5 // pred_check_branch
      %353 = sbr.rel (%p351) target = $region44
    $region43: #{rendering_net_forward.1} parent=5 // pred_region
      // Predicated region
      $region45: #{rendering_net_forward.1} parent=43 // pred_check
        %p354 = pneg %p51
      $region46: #{rendering_net_forward.1} parent=43 // pred_check_branch
        %356 = sbr.rel (%p354) target = $region48
      $region47: #{rendering_net_forward.1} parent=43 // pred_region
        %s357 = smul.u32 32, %s25
        %p358 = scmp.lt.s32.totalorder %s24, 1
        %s359 = scalar_select %p358, %s24, 1
        %p360 = scmp.lt.s32.totalorder %s357, 63
        %s361 = scalar_select %p360, %s357, 63
        %s362 = smul.addr %s359, 64
        %s363 = sadd.s32 %s361, %s362
        %s364 = smul.addr %s363, 8
        %s365 = scalar_lea.vmem %s0, %s364
        %s366 = smul.u32 32, %s25
      $region48: #{rendering_net_forward.1} parent=43 // pred_fallthru
        _
      // Predicated region
      $region49: #{rendering_net_forward.1} parent=43 // pred_check
        %p367 = pneg %p79
      $region50: #{rendering_net_forward.1} parent=43 // pred_check_branch
        %369 = sbr.rel (%p367) target = $region52
      $region51: #{rendering_net_forward.1} parent=43 // pred_region
        %s370 = smul.u32 32, %s25
        %p371 = scmp.lt.s32.totalorder %s24, 1
        %s372 = scalar_select %p371, %s24, 1
        %p373 = scmp.lt.s32.totalorder %s370, 63
        %s374 = scalar_select %p373, %s370, 63
        %s375 = smul.addr %s372, 64
        %s376 = sadd.s32 %s374, %s375
        %s377 = smul.addr %s376, 8
        %s378 = scalar_lea.vmem %s1, %s377
        %s379 = smul.u32 32, %s25
      $region52: #{rendering_net_forward.1} parent=43 // pred_fallthru
        _
      // Predicated region
      $region53: #{rendering_net_forward.1} parent=43 // pred_check
        %p380 = pneg %p107
      $region54: #{rendering_net_forward.1} parent=43 // pred_check_branch
        %382 = sbr.rel (%p380) target = $region56
      $region55: #{rendering_net_forward.1} parent=43 // pred_region
        %s383 = smul.u32 32, %s25
        %p384 = scmp.lt.s32.totalorder %s24, 1
        %s385 = scalar_select %p384, %s24, 1
        %p386 = scmp.lt.s32.totalorder %s383, 63
        %s387 = scalar_select %p386, %s383, 63
        %s388 = smul.addr %s385, 64
        %s389 = sadd.s32 %s387, %s388
        %s390 = smul.addr %s389, 8
        %s391 = scalar_lea.vmem %s2, %s390
        %s392 = smul.u32 32, %s25
      $region56: #{rendering_net_forward.1} parent=43 // pred_fallthru
        _
      // Predicated region
      $region57: #{rendering_net_forward.1} parent=43 // pred_check
        %p393 = pneg %p133
      $region58: #{rendering_net_forward.1} parent=43 // pred_check_branch
        %395 = sbr.rel (%p393) target = $region60
      $region59: #{rendering_net_forward.1} parent=43 // pred_region
        %p396 = scmp.lt.s32.totalorder %s24, 1
        %s397 = scalar_select %p396, %s24, 1
        %s398 = scalar_lea.vmem %s3, %s397
      $region60: #{rendering_net_forward.1} parent=43 // pred_fallthru
        _
    $region44: #{rendering_net_forward.1} parent=5 // pred_fallthru
      _
    %p399 = scmp.le.s32.totalorder 1, %s17
    %p400 = scmp.lt.s32.totalorder %s17, 5
    %p401 = pnand %p399, %p400
    %p402 = pneg %p401
    // Predicated region
    $region61: #{rendering_net_forward.1} parent=5 // pred_check
      _
    $region62: #{rendering_net_forward.1} parent=5 // pred_check_branch
      %404 = sbr.rel (%p401) target = $region64
    $region63: #{rendering_net_forward.1} parent=5 // pred_region
      %s405 = ssub.s32 %s17, 1
      %s406 = smul.u32 32, %s27
      %p407 = scmp.lt.s32.totalorder %s26, 1
      %s408 = scalar_select %p407, %s26, 1
      %p409 = scmp.lt.s32.totalorder %s406, 63
      %s410 = scalar_select %p409, %s406, 63
      %s411 = smul.addr %s408, 64
      %s412 = sadd.s32 %s410, %s411
      %s413 = smul.addr %s412, 8
      %s414 = scalar_lea.vmem %s0, %s413
      %p415 = pneg %p57
      %p416 = pneg %p54
      %s417 = smul.u32 32, %s27
      %p418 = scmp.lt.s32.totalorder %s26, 1
      %s419 = scalar_select %p418, %s26, 1
      %p420 = scmp.lt.s32.totalorder %s417, 63
      %s421 = scalar_select %p420, %s417, 63
      %s422 = smul.addr %s419, 64
      %s423 = sadd.s32 %s421, %s422
      %s424 = smul.addr %s423, 8
      %s425 = scalar_lea.vmem %s1, %s424
      %p426 = pneg %p85
      %p427 = pneg %p82
      %s428 = smul.u32 32, %s27
      %p429 = scmp.lt.s32.totalorder %s26, 1
      %s430 = scalar_select %p429, %s26, 1
      %p431 = scmp.lt.s32.totalorder %s428, 63
      %s432 = scalar_select %p431, %s428, 63
      %s433 = smul.addr %s430, 64
      %s434 = sadd.s32 %s432, %s433
      %s435 = smul.addr %s434, 8
      %s436 = scalar_lea.vmem %s2, %s435
      %p437 = pneg %p113
      %p438 = pneg %p110
      %p439 = scmp.lt.s32.totalorder %s26, 1
      %s440 = scalar_select %p439, %s26, 1
      %s441 = scalar_lea.vmem %s3, %s440
      %p442 = pneg %p139
      %p443 = pneg %p136
      %p444 = pneg %p160
      %p445 = pneg %p157
      %p446 = pneg %p181
      %p447 = pneg %p178
      %p448 = pneg %p202
      %p449 = pneg %p199
      %p450 = pneg %p223
      %p451 = pneg %p220
      %p452 = pneg %p244
      %p453 = pneg %p241
      %p454 = pneg %p265
      %p455 = pneg %p262
      %p456 = pneg %p286
      %p457 = pneg %p283
      %p458 = pneg %p314
      %p459 = pneg %p311
      %s460 = smul.u32 32, %s27
      %p461 = scmp.lt.s32.totalorder %s26, 1
      %s462 = scalar_select %p461, %s26, 1
      %p463 = scmp.lt.s32.totalorder %s460, 63
      %s464 = scalar_select %p463, %s460, 63
      %s465 = smul.addr %s462, 64
      %s466 = sadd.s32 %s464, %s465
      %s467 = smul.addr %s466, 8
      %s468 = scalar_lea.vmem %s11, %s467
      %s469 = smul.u32 32, %s27
      %p470 = scmp.lt.s32.totalorder %s26, 1
      %s471 = scalar_select %p470, %s26, 1
      %p472 = scmp.lt.s32.totalorder %s469, 63
      %s473 = scalar_select %p472, %s469, 63
      %s474 = smul.addr %s471, 64
      %s475 = sadd.s32 %s473, %s474
      %s476 = smul.addr %s475, 8
      %s477 = scalar_lea.vmem %s0, %s476
      %s478 = smul.u32 32, %s27
      %s479 = smul.u32 32, %s27
      %p480 = scmp.lt.s32.totalorder %s26, 1
      %s481 = scalar_select %p480, %s26, 1
      %p482 = scmp.lt.s32.totalorder %s479, 63
      %s483 = scalar_select %p482, %s479, 63
      %s484 = smul.addr %s481, 64
      %s485 = sadd.s32 %s483, %s484
      %s486 = smul.addr %s485, 8
      %s487 = scalar_lea.vmem %s1, %s486
      %s488 = smul.u32 32, %s27
      %s489 = smul.u32 32, %s27
      %p490 = scmp.lt.s32.totalorder %s26, 1
      %s491 = scalar_select %p490, %s26, 1
      %p492 = scmp.lt.s32.totalorder %s489, 63
      %s493 = scalar_select %p492, %s489, 63
      %s494 = smul.addr %s491, 64
      %s495 = sadd.s32 %s493, %s494
      %s496 = smul.addr %s495, 8
      %s497 = scalar_lea.vmem %s2, %s496
      %s498 = smul.u32 32, %s27
      %p499 = scmp.lt.s32.totalorder %s26, 1
      %s500 = scalar_select %p499, %s26, 1
      %s501 = scalar_lea.vmem %s3, %s500
      %s502 = smul.u32 32, %s27
      %p503 = scmp.lt.s32.totalorder %s26, 1
      %s504 = scalar_select %p503, %s26, 1
      %p505 = scmp.lt.s32.totalorder %s502, 63
      %s506 = scalar_select %p505, %s502, 63
      %s507 = smul.addr %s504, 64
      %s508 = sadd.s32 %s506, %s507
      %s509 = smul.addr %s508, 8
      %s510 = scalar_lea.vmem %s11, %s509
      %s511 = smul.u32 32, %s27
      %v512 = vld [vmem:[%s477] sm:$0xff]
      %v513 = vld [vmem:[%s477 + $0x8] sm:$0xff]
      %v514 = vld [vmem:[%s477 + $0x10] sm:$0xff]
      %v515 = vld [vmem:[%s477 + $0x18] sm:$0xff]
      %v516 = vld [vmem:[%s477 + $0x20] sm:$0xff]
      %v517 = vld [vmem:[%s477 + $0x28] sm:$0xff]
      %v518 = vld [vmem:[%s477 + $0x30] sm:$0xff]
      %v519 = vld [vmem:[%s477 + $0x38] sm:$0xff]
      %v520 = vld [vmem:[%s477 + $0x40] sm:$0xff]
      %v521 = vld [vmem:[%s477 + $0x48] sm:$0xff]
      %v522 = vld [vmem:[%s477 + $0x50] sm:$0xff]
      %v523 = vld [vmem:[%s477 + $0x58] sm:$0xff]
      %v524 = vld [vmem:[%s477 + $0x60] sm:$0xff]
      %v525 = vld [vmem:[%s477 + $0x68] sm:$0xff]
      %v526 = vld [vmem:[%s477 + $0x70] sm:$0xff]
      %v527 = vld [vmem:[%s477 + $0x78] sm:$0xff]
      %v528 = vld [vmem:[%s477 + $0x80] sm:$0xff]
      %v529 = vld [vmem:[%s477 + $0x88] sm:$0xff]
      %v530 = vld [vmem:[%s477 + $0x90] sm:$0xff]
      %v531 = vld [vmem:[%s477 + $0x98] sm:$0xff]
      %v532 = vld [vmem:[%s477 + $0xa0] sm:$0xff]
      %v533 = vld [vmem:[%s477 + $0xa8] sm:$0xff]
      %v534 = vld [vmem:[%s477 + $0xb0] sm:$0xff]
      %v535 = vld [vmem:[%s477 + $0xb8] sm:$0xff]
      %v536 = vld [vmem:[%s477 + $0xc0] sm:$0xff]
      %v537 = vld [vmem:[%s477 + $0xc8] sm:$0xff]
      %v538 = vld [vmem:[%s477 + $0xd0] sm:$0xff]
      %v539 = vld [vmem:[%s477 + $0xd8] sm:$0xff]
      %v540 = vld [vmem:[%s477 + $0xe0] sm:$0xff]
      %v541 = vld [vmem:[%s477 + $0xe8] sm:$0xff]
      %v542 = vld [vmem:[%s477 + $0xf0] sm:$0xff]
      %v543 = vld [vmem:[%s477 + $0xf8] sm:$0xff]
      %v544 = vld [vmem:[%s487] sm:$0xff]
      %v545 = vld [vmem:[%s487 + $0x8] sm:$0xff]
      %v546 = vld [vmem:[%s487 + $0x10] sm:$0xff]
      %v547 = vld [vmem:[%s487 + $0x18] sm:$0xff]
      %v548 = vld [vmem:[%s487 + $0x20] sm:$0xff]
      %v549 = vld [vmem:[%s487 + $0x28] sm:$0xff]
      %v550 = vld [vmem:[%s487 + $0x30] sm:$0xff]
      %v551 = vld [vmem:[%s487 + $0x38] sm:$0xff]
      %v552 = vld [vmem:[%s487 + $0x40] sm:$0xff]
      %v553 = vld [vmem:[%s487 + $0x48] sm:$0xff]
      %v554 = vld [vmem:[%s487 + $0x50] sm:$0xff]
      %v555 = vld [vmem:[%s487 + $0x58] sm:$0xff]
      %v556 = vld [vmem:[%s487 + $0x60] sm:$0xff]
      %v557 = vld [vmem:[%s487 + $0x68] sm:$0xff]
      %v558 = vld [vmem:[%s487 + $0x70] sm:$0xff]
      %v559 = vld [vmem:[%s487 + $0x78] sm:$0xff]
      %v560 = vld [vmem:[%s487 + $0x80] sm:$0xff]
      %v561 = vld [vmem:[%s487 + $0x88] sm:$0xff]
      %v562 = vld [vmem:[%s487 + $0x90] sm:$0xff]
      %v563 = vld [vmem:[%s487 + $0x98] sm:$0xff]
      %v564 = vld [vmem:[%s487 + $0xa0] sm:$0xff]
      %v565 = vld [vmem:[%s487 + $0xa8] sm:$0xff]
      %v566 = vld [vmem:[%s487 + $0xb0] sm:$0xff]
      %v567 = vld [vmem:[%s487 + $0xb8] sm:$0xff]
      %v568 = vld [vmem:[%s487 + $0xc0] sm:$0xff]
      %v569 = vld [vmem:[%s487 + $0xc8] sm:$0xff]
      %v570 = vld [vmem:[%s487 + $0xd0] sm:$0xff]
      %v571 = vld [vmem:[%s487 + $0xd8] sm:$0xff]
      %v572 = vld [vmem:[%s487 + $0xe0] sm:$0xff]
      %v573 = vld [vmem:[%s487 + $0xe8] sm:$0xff]
      %v574 = vld [vmem:[%s487 + $0xf0] sm:$0xff]
      %v575 = vld [vmem:[%s487 + $0xf8] sm:$0xff]
      %v576 = vld [vmem:[%s497] sm:$0xff]
      %v577 = vld [vmem:[%s497 + $0x8] sm:$0xff]
      %v578 = vld [vmem:[%s497 + $0x10] sm:$0xff]
      %v579 = vld [vmem:[%s497 + $0x18] sm:$0xff]
      %v580 = vld [vmem:[%s497 + $0x20] sm:$0xff]
      %v581 = vld [vmem:[%s497 + $0x28] sm:$0xff]
      %v582 = vld [vmem:[%s497 + $0x30] sm:$0xff]
      %v583 = vld [vmem:[%s497 + $0x38] sm:$0xff]
      %v584 = vld [vmem:[%s497 + $0x40] sm:$0xff]
      %v585 = vld [vmem:[%s497 + $0x48] sm:$0xff]
      %v586 = vld [vmem:[%s497 + $0x50] sm:$0xff]
      %v587 = vld [vmem:[%s497 + $0x58] sm:$0xff]
      %v588 = vld [vmem:[%s497 + $0x60] sm:$0xff]
      %v589 = vld [vmem:[%s497 + $0x68] sm:$0xff]
      %v590 = vld [vmem:[%s497 + $0x70] sm:$0xff]
      %v591 = vld [vmem:[%s497 + $0x78] sm:$0xff]
      %v592 = vld [vmem:[%s497 + $0x80] sm:$0xff]
      %v593 = vld [vmem:[%s497 + $0x88] sm:$0xff]
      %v594 = vld [vmem:[%s497 + $0x90] sm:$0xff]
      %v595 = vld [vmem:[%s497 + $0x98] sm:$0xff]
      %v596 = vld [vmem:[%s497 + $0xa0] sm:$0xff]
      %v597 = vld [vmem:[%s497 + $0xa8] sm:$0xff]
      %v598 = vld [vmem:[%s497 + $0xb0] sm:$0xff]
      %v599 = vld [vmem:[%s497 + $0xb8] sm:$0xff]
      %v600 = vld [vmem:[%s497 + $0xc0] sm:$0xff]
      %v601 = vld [vmem:[%s497 + $0xc8] sm:$0xff]
      %v602 = vld [vmem:[%s497 + $0xd0] sm:$0xff]
      %v603 = vld [vmem:[%s497 + $0xd8] sm:$0xff]
      %v604 = vld [vmem:[%s497 + $0xe0] sm:$0xff]
      %v605 = vld [vmem:[%s497 + $0xe8] sm:$0xff]
      %v606 = vld [vmem:[%s497 + $0xf0] sm:$0xff]
      %v607 = vld [vmem:[%s497 + $0xf8] sm:$0xff]
      %v608 = vld [vmem:[%s6] sm:$0xff]
      %v609 = vld [vmem:[%s6 + $0x8] sm:$0xff]
      %v610 = vld [vmem:[%s6 + $0x10] sm:$0xff]
      %v611 = vld [vmem:[%s6 + $0x18] sm:$0xff]
      %v612 = vld [vmem:[%s4] sm:$0x7]
      %vm613 = vcmask 23552
      %v615 = vsel %vm613, %v512, 0
      %v618 = vsel %vm613, %v513, 0
      %v621 = vsel %vm613, %v514, 0
      %v624 = vsel %vm613, %v515, 0
      %v627 = vsel %vm613, %v516, 0
      %v630 = vsel %vm613, %v517, 0
      %v633 = vsel %vm613, %v518, 0
      %v636 = vsel %vm613, %v519, 0
      %v639 = vsel %vm613, %v520, 0
      %v642 = vsel %vm613, %v521, 0
      %v645 = vsel %vm613, %v522, 0
      %v648 = vsel %vm613, %v523, 0
      %v651 = vsel %vm613, %v524, 0
      %v654 = vsel %vm613, %v525, 0
      %v657 = vsel %vm613, %v526, 0
      %v660 = vsel %vm613, %v527, 0
      %v663 = vsel %vm613, %v528, 0
      %v666 = vsel %vm613, %v529, 0
      %v669 = vsel %vm613, %v530, 0
      %v672 = vsel %vm613, %v531, 0
      %v675 = vsel %vm613, %v532, 0
      %v678 = vsel %vm613, %v533, 0
      %v681 = vsel %vm613, %v534, 0
      %v684 = vsel %vm613, %v535, 0
      %v687 = vsel %vm613, %v536, 0
      %v690 = vsel %vm613, %v537, 0
      %v693 = vsel %vm613, %v538, 0
      %v696 = vsel %vm613, %v539, 0
      %v699 = vsel %vm613, %v540, 0
      %v702 = vsel %vm613, %v541, 0
      %v705 = vsel %vm613, %v542, 0
      %v708 = vsel %vm613, %v543, 0
      %vm710 = vcmask 1042432
      %v712 = vsel %vm710, %v612, 0
      %714 = vmatprep.subr.mxu0 0.0
      %715 = vmatpush1.msra.mxu0 %v712
      %716 = vmatprep.subr.mxu0 0.0
      %717 = vmatpush1.msra.mxu0 0.0
      %718 = vmatprep.subr.mxu0 0.0
      %719 = vmatpush1.msra.mxu0 0.0
      %720 = vmatprep.subr.mxu0 0.0
      %721 = vmatpush1.msra.mxu0 0.0
      %722 = vmatprep.subr.mxu0 0.0
      %723 = vmatpush1.msra.mxu0 0.0
      %724 = vmatprep.subr.mxu0 0.0
      %725 = vmatpush1.msra.mxu0 0.0
      %726 = vmatprep.subr.mxu0 0.0
      %727 = vmatpush1.msra.mxu0 0.0
      %728 = vmatprep.subr.mxu0 0.0
      %729 = vmatpush1.msra.mxu0 0.0
      %730 = vmatprep.subr.mxu0 0.0
      %731 = vmatpush1.msra.mxu0 0.0
      %732 = vmatprep.subr.mxu0 0.0
      %733 = vmatpush1.msra.mxu0 0.0
      %734 = vmatprep.subr.mxu0 0.0
      %735 = vmatpush1.msra.mxu0 0.0
      %736 = vmatprep.subr.mxu0 0.0
      %737 = vmatpush1.msra.mxu0 0.0
      %738 = vmatprep.subr.mxu0 0.0
      %739 = vmatpush1.msra.mxu0 0.0
      %740 = vmatprep.subr.mxu0 0.0
      %741 = vmatpush1.msra.mxu0 0.0
      %742 = vmatprep.subr.mxu0 0.0
      %743 = vmatpush1.msra.mxu0 0.0
      %744 = vmatprep.subr.mxu0 0.0
      %745 = vmatpush1.msra.mxu0 0.0
      %746 = vmatprep.subr.mxu0 0.0
      %747 = vmatpush1.msra.mxu0 0.0
      %748 = vmatprep.subr.mxu0 0.0
      %749 = vmatpush1.msra.mxu0 0.0
      %750 = vmatprep.subr.mxu0 0.0
      %751 = vmatpush1.msra.mxu0 0.0
      %752 = vmatprep.subr.mxu0 0.0
      %753 = vmatpush1.msra.mxu0 0.0
      %754 = vmatprep.subr.mxu0 0.0
      %755 = vmatpush1.msra.mxu0 0.0
      %756 = vmatprep.subr.mxu0 0.0
      %757 = vmatpush1.msra.mxu0 0.0
      %758 = vmatprep.subr.mxu0 0.0
      %759 = vmatpush1.msra.mxu0 0.0
      %760 = vmatprep.subr.mxu0 0.0
      %761 = vmatpush1.msra.mxu0 0.0
      %762 = vmatprep.subr.mxu0 0.0
      %763 = vmatpush1.msra.mxu0 0.0
      %764 = vmatprep.subr.mxu0 0.0
      %765 = vmatpush1.msra.mxu0 0.0
      %766 = vmatprep.subr.mxu0 0.0
      %767 = vmatpush1.msra.mxu0 0.0
      %768 = vmatprep.subr.mxu0 0.0
      %769 = vmatpush1.msra.mxu0 0.0
      %770 = vmatprep.subr.mxu0 0.0
      %771 = vmatpush1.msra.mxu0 0.0
      %772 = vmatprep.subr.mxu0 0.0
      %773 = vmatpush1.msra.mxu0 0.0
      %774 = vmatprep.subr.mxu0 0.0
      %775 = vmatpush1.msra.mxu0 0.0
      %776 = vmatprep.subr.mxu0 0.0
      %777 = vmatpush1.msra.mxu0 0.0
      %778 = vmatprep.mubr.f32.mxu0 0.0
      %779 = vmatmul.mubr.f32.gmra.mrb[0].mxu0 %v615
      %v780 = vpop.f32.mrb[0].mxu0
      %v781 = vadd.f32 0.0, %v780
      %v782 = vpop.f32.mrb[0].mxu0
      %783 = vmatprep.mubr.f32.mxu0 0.0
      %784 = vmatmul.mubr.f32.gmra.mrb[0].mxu0 %v618
      %v785 = vpop.f32.mrb[0].mxu0
      %v786 = vadd.f32 0.0, %v785
      %v787 = vpop.f32.mrb[0].mxu0
      %788 = vmatprep.mubr.f32.mxu0 0.0
      %789 = vmatmul.mubr.f32.gmra.mrb[0].mxu0 %v621
      %v790 = vpop.f32.mrb[0].mxu0
      %v791 = vadd.f32 0.0, %v790
      %v792 = vpop.f32.mrb[0].mxu0
      %793 = vmatprep.mubr.f32.mxu0 0.0
      %794 = vmatmul.mubr.f32.gmra.mrb[0].mxu0 %v624
      %v795 = vpop.f32.mrb[0].mxu0
      %v796 = vadd.f32 0.0, %v795
      %v797 = vpop.f32.mrb[0].mxu0
      %798 = vmatprep.mubr.f32.mxu0 0.0
      %799 = vmatmul.mubr.f32.gmra.mrb[0].mxu0 %v627
      %v800 = vpop.f32.mrb[0].mxu0
      %v801 = vadd.f32 0.0, %v800
      %v802 = vpop.f32.mrb[0].mxu0
      %803 = vmatprep.mubr.f32.mxu0 0.0
      %804 = vmatmul.mubr.f32.gmra.mrb[0].mxu0 %v630
      %v805 = vpop.f32.mrb[0].mxu0
      %v806 = vadd.f32 0.0, %v805
      %v807 = vpop.f32.mrb[0].mxu0
      %808 = vmatprep.mubr.f32.mxu0 0.0
      %809 = vmatmul.mubr.f32.gmra.mrb[0].mxu0 %v633
      %v810 = vpop.f32.mrb[0].mxu0
      %v811 = vadd.f32 0.0, %v810
      %v812 = vpop.f32.mrb[0].mxu0
      %813 = vmatprep.mubr.f32.mxu0 0.0
      %814 = vmatmul.mubr.f32.gmra.mrb[0].mxu0 %v636
      %v815 = vpop.f32.mrb[0].mxu0
      %v816 = vadd.f32 0.0, %v815
      %v817 = vpop.f32.mrb[0].mxu0
      %818 = vmatprep.mubr.f32.mxu0 0.0
      %819 = vmatmul.mubr.f32.gmra.mrb[0].mxu0 %v639
      %v820 = vpop.f32.mrb[0].mxu0
      %v821 = vadd.f32 0.0, %v820
      %v822 = vpop.f32.mrb[0].mxu0
      %823 = vmatprep.mubr.f32.mxu0 0.0
      %824 = vmatmul.mubr.f32.gmra.mrb[0].mxu0 %v642
      %v825 = vpop.f32.mrb[0].mxu0
      %v826 = vadd.f32 0.0, %v825
      %v827 = vpop.f32.mrb[0].mxu0
      %828 = vmatprep.mubr.f32.mxu0 0.0
      %829 = vmatmul.mubr.f32.gmra.mrb[0].mxu0 %v645
      %v830 = vpop.f32.mrb[0].mxu0
      %v831 = vadd.f32 0.0, %v830
      %v832 = vpop.f32.mrb[0].mxu0
      %833 = vmatprep.mubr.f32.mxu0 0.0
      %834 = vmatmul.mubr.f32.gmra.mrb[0].mxu0 %v648
      %v835 = vpop.f32.mrb[0].mxu0
      %v836 = vadd.f32 0.0, %v835
      %v837 = vpop.f32.mrb[0].mxu0
      %838 = vmatprep.mubr.f32.mxu0 0.0
      %839 = vmatmul.mubr.f32.gmra.mrb[0].mxu0 %v651
      %v840 = vpop.f32.mrb[0].mxu0
      %v841 = vadd.f32 0.0, %v840
      %v842 = vpop.f32.mrb[0].mxu0
      %843 = vmatprep.mubr.f32.mxu0 0.0
      %844 = vmatmul.mubr.f32.gmra.mrb[0].mxu0 %v654
      %v845 = vpop.f32.mrb[0].mxu0
      %v846 = vadd.f32 0.0, %v845
      %v847 = vpop.f32.mrb[0].mxu0
      %848 = vmatprep.mubr.f32.mxu0 0.0
      %849 = vmatmul.mubr.f32.gmra.mrb[0].mxu0 %v657
      %v850 = vpop.f32.mrb[0].mxu0
      %v851 = vadd.f32 0.0, %v850
      %v852 = vpop.f32.mrb[0].mxu0
      %853 = vmatprep.mubr.f32.mxu0 0.0
      %854 = vmatmul.mubr.f32.gmra.mrb[0].mxu0 %v660
      %v855 = vpop.f32.mrb[0].mxu0
      %v856 = vadd.f32 0.0, %v855
      %v857 = vpop.f32.mrb[0].mxu0
      %858 = vmatprep.mubr.f32.mxu0 0.0
      %859 = vmatmul.mubr.f32.gmra.mrb[0].mxu0 %v663
      %v860 = vpop.f32.mrb[0].mxu0
      %v861 = vadd.f32 0.0, %v860
      %v862 = vpop.f32.mrb[0].mxu0
      %863 = vmatprep.mubr.f32.mxu0 0.0
      %864 = vmatmul.mubr.f32.gmra.mrb[0].mxu0 %v666
      %v865 = vpop.f32.mrb[0].mxu0
      %v866 = vadd.f32 0.0, %v865
      %v867 = vpop.f32.mrb[0].mxu0
      %868 = vmatprep.mubr.f32.mxu0 0.0
      %869 = vmatmul.mubr.f32.gmra.mrb[0].mxu0 %v669
      %v870 = vpop.f32.mrb[0].mxu0
      %v871 = vadd.f32 0.0, %v870
      %v872 = vpop.f32.mrb[0].mxu0
      %873 = vmatprep.mubr.f32.mxu0 0.0
      %874 = vmatmul.mubr.f32.gmra.mrb[0].mxu0 %v672
      %v875 = vpop.f32.mrb[0].mxu0
      %v876 = vadd.f32 0.0, %v875
      %v877 = vpop.f32.mrb[0].mxu0
      %878 = vmatprep.mubr.f32.mxu0 0.0
      %879 = vmatmul.mubr.f32.gmra.mrb[0].mxu0 %v675
      %v880 = vpop.f32.mrb[0].mxu0
      %v881 = vadd.f32 0.0, %v880
      %v882 = vpop.f32.mrb[0].mxu0
      %883 = vmatprep.mubr.f32.mxu0 0.0
      %884 = vmatmul.mubr.f32.gmra.mrb[0].mxu0 %v678
      %v885 = vpop.f32.mrb[0].mxu0
      %v886 = vadd.f32 0.0, %v885
      %v887 = vpop.f32.mrb[0].mxu0
      %888 = vmatprep.mubr.f32.mxu0 0.0
      %889 = vmatmul.mubr.f32.gmra.mrb[0].mxu0 %v681
      %v890 = vpop.f32.mrb[0].mxu0
      %v891 = vadd.f32 0.0, %v890
      %v892 = vpop.f32.mrb[0].mxu0
      %893 = vmatprep.mubr.f32.mxu0 0.0
      %894 = vmatmul.mubr.f32.gmra.mrb[0].mxu0 %v684
      %v895 = vpop.f32.mrb[0].mxu0
      %v896 = vadd.f32 0.0, %v895
      %v897 = vpop.f32.mrb[0].mxu0
      %898 = vmatprep.mubr.f32.mxu0 0.0
      %899 = vmatmul.mubr.f32.gmra.mrb[0].mxu0 %v687
      %v900 = vpop.f32.mrb[0].mxu0
      %v901 = vadd.f32 0.0, %v900
      %v902 = vpop.f32.mrb[0].mxu0
      %903 = vmatprep.mubr.f32.mxu0 0.0
      %904 = vmatmul.mubr.f32.gmra.mrb[0].mxu0 %v690
      %v905 = vpop.f32.mrb[0].mxu0
      %v906 = vadd.f32 0.0, %v905
      %v907 = vpop.f32.mrb[0].mxu0
      %908 = vmatprep.mubr.f32.mxu0 0.0
      %909 = vmatmul.mubr.f32.gmra.mrb[0].mxu0 %v693
      %v910 = vpop.f32.mrb[0].mxu0
      %v911 = vadd.f32 0.0, %v910
      %v912 = vpop.f32.mrb[0].mxu0
      %913 = vmatprep.mubr.f32.mxu0 0.0
      %914 = vmatmul.mubr.f32.gmra.mrb[0].mxu0 %v696
      %v915 = vpop.f32.mrb[0].mxu0
      %v916 = vadd.f32 0.0, %v915
      %v917 = vpop.f32.mrb[0].mxu0
      %918 = vmatprep.mubr.f32.mxu0 0.0
      %919 = vmatmul.mubr.f32.gmra.mrb[0].mxu0 %v699
      %v920 = vpop.f32.mrb[0].mxu0
      %v921 = vadd.f32 0.0, %v920
      %v922 = vpop.f32.mrb[0].mxu0
      %923 = vmatprep.mubr.f32.mxu0 0.0
      %924 = vmatmul.mubr.f32.gmra.mrb[0].mxu0 %v702
      %v925 = vpop.f32.mrb[0].mxu0
      %v926 = vadd.f32 0.0, %v925
      %v927 = vpop.f32.mrb[0].mxu0
      %928 = vmatprep.mubr.f32.mxu0 0.0
      %929 = vmatmul.mubr.f32.gmra.mrb[0].mxu0 %v705
      %v930 = vpop.f32.mrb[0].mxu0
      %v931 = vadd.f32 0.0, %v930
      %v932 = vpop.f32.mrb[0].mxu0
      %933 = vmatprep.mubr.f32.mxu0 0.0
      %934 = vmatmul.mubr.f32.gmra.mrb[0].mxu0 %v708
      %v935 = vpop.f32.mrb[0].mxu0
      %v936 = vadd.f32 0.0, %v935
      %v937 = vpop.f32.mrb[0].mxu0
      %938 = vdwg.mxu0
      %vm939 = vcmask 261120
      %v941 = vsel %vm939, %v576, 0
      %v944 = vsel %vm939, %v577, 0
      %v947 = vsel %vm939, %v578, 0
      %v950 = vsel %vm939, %v579, 0
      %v953 = vsel %vm939, %v580, 0
      %v956 = vsel %vm939, %v581, 0
      %v959 = vsel %vm939, %v582, 0
      %v962 = vsel %vm939, %v583, 0
      %v965 = vsel %vm939, %v584, 0
      %v968 = vsel %vm939, %v585, 0
      %v971 = vsel %vm939, %v586, 0
      %v974 = vsel %vm939, %v587, 0
      %v977 = vsel %vm939, %v588, 0
      %v980 = vsel %vm939, %v589, 0
      %v983 = vsel %vm939, %v590, 0
      %v986 = vsel %vm939, %v591, 0
      %v989 = vsel %vm939, %v592, 0
      %v992 = vsel %vm939, %v593, 0
      %v995 = vsel %vm939, %v594, 0
      %v998 = vsel %vm939, %v595, 0
      %v1001 = vsel %vm939, %v596, 0
      %v1004 = vsel %vm939, %v597, 0
      %v1007 = vsel %vm939, %v598, 0
      %v1010 = vsel %vm939, %v599, 0
      %v1013 = vsel %vm939, %v600, 0
      %v1016 = vsel %vm939, %v601, 0
      %v1019 = vsel %vm939, %v602, 0
      %v1022 = vsel %vm939, %v603, 0
      %v1025 = vsel %vm939, %v604, 0
      %v1028 = vsel %vm939, %v605, 0
      %v1031 = vsel %vm939, %v606, 0
      %v1034 = vsel %vm939, %v607, 0
      %1036 = vmatprep.subr.mxu0 0.0
      %1037 = vmatpush1.msra.mxu0 %v608
      %1038 = vmatprep.subr.mxu0 0.0
      %1039 = vmatpush1.msra.mxu0 %v609
      %1040 = vmatprep.subr.mxu0 0.0
      %1041 = vmatpush1.msra.mxu0 %v610
      %1042 = vmatprep.subr.mxu0 0.0
      %1043 = vmatpush1.msra.mxu0 %v611
      %1044 = vmatprep.subr.mxu0 0.0
      %1045 = vmatpush1.msra.mxu0 0.0
      %1046 = vmatprep.subr.mxu0 0.0
      %1047 = vmatpush1.msra.mxu0 0.0
      %1048 = vmatprep.subr.mxu0 0.0
      %1049 = vmatpush1.msra.mxu0 0.0
      %1050 = vmatprep.subr.mxu0 0.0
      %1051 = vmatpush1.msra.mxu0 0.0
      %1052 = vmatprep.subr.mxu0 0.0
      %1053 = vmatpush1.msra.mxu0 0.0
      %1054 = vmatprep.subr.mxu0 0.0
      %1055 = vmatpush1.msra.mxu0 0.0
      %1056 = vmatprep.subr.mxu0 0.0
      %1057 = vmatpush1.msra.mxu0 0.0
      %1058 = vmatprep.subr.mxu0 0.0
      %1059 = vmatpush1.msra.mxu0 0.0
      %1060 = vmatprep.subr.mxu0 0.0
      %1061 = vmatpush1.msra.mxu0 0.0
      %1062 = vmatprep.subr.mxu0 0.0
      %1063 = vmatpush1.msra.mxu0 0.0
      %1064 = vmatprep.subr.mxu0 0.0
      %1065 = vmatpush1.msra.mxu0 0.0
      %1066 = vmatprep.subr.mxu0 0.0
      %1067 = vmatpush1.msra.mxu0 0.0
      %1068 = vmatprep.subr.mxu0 0.0
      %1069 = vmatpush1.msra.mxu0 0.0
      %1070 = vmatprep.subr.mxu0 0.0
      %1071 = vmatpush1.msra.mxu0 0.0
      %1072 = vmatprep.subr.mxu0 0.0
      %1073 = vmatpush1.msra.mxu0 0.0
      %1074 = vmatprep.subr.mxu0 0.0
      %1075 = vmatpush1.msra.mxu0 0.0
      %1076 = vmatprep.subr.mxu0 0.0
      %1077 = vmatpush1.msra.mxu0 0.0
      %1078 = vmatprep.subr.mxu0 0.0
      %1079 = vmatpush1.msra.mxu0 0.0
      %1080 = vmatprep.subr.mxu0 0.0
      %1081 = vmatpush1.msra.mxu0 0.0
      %1082 = vmatprep.subr.mxu0 0.0
      %1083 = vmatpush1.msra.mxu0 0.0
      %1084 = vmatprep.subr.mxu0 0.0
      %1085 = vmatpush1.msra.mxu0 0.0
      %1086 = vmatprep.subr.mxu0 0.0
      %1087 = vmatpush1.msra.mxu0 0.0
      %1088 = vmatprep.subr.mxu0 0.0
      %1089 = vmatpush1.msra.mxu0 0.0
      %1090 = vmatprep.subr.mxu0 0.0
      %1091 = vmatpush1.msra.mxu0 0.0
      %1092 = vmatprep.subr.mxu0 0.0
      %1093 = vmatpush1.msra.mxu0 0.0
      %1094 = vmatprep.subr.mxu0 0.0
      %1095 = vmatpush1.msra.mxu0 0.0
      %1096 = vmatprep.subr.mxu0 0.0
      %1097 = vmatpush1.msra.mxu0 0.0
      %1098 = vmatprep.subr.mxu0 0.0
      %1099 = vmatpush1.msra.mxu0 0.0
      %1100 = vmatprep.mubr.f32.mxu0 0.0
      %1101 = vmatmul.mubr.f32.gmra.mrb[0].mxu0 %v941
      %v1102 = vpop.f32.mrb[0].mxu0
      %v1103 = vadd.f32 %v781, %v1102
      %v1104 = vpop.f32.mrb[0].mxu0
      %1105 = vmatprep.mubr.f32.mxu0 0.0
      %1106 = vmatmul.mubr.f32.gmra.mrb[0].mxu0 %v944
      %v1107 = vpop.f32.mrb[0].mxu0
      %v1108 = vadd.f32 %v786, %v1107
      %v1109 = vpop.f32.mrb[0].mxu0
      %1110 = vmatprep.mubr.f32.mxu0 0.0
      %1111 = vmatmul.mubr.f32.gmra.mrb[0].mxu0 %v947
      %v1112 = vpop.f32.mrb[0].mxu0
      %v1113 = vadd.f32 %v791, %v1112
      %v1114 = vpop.f32.mrb[0].mxu0
      %1115 = vmatprep.mubr.f32.mxu0 0.0
      %1116 = vmatmul.mubr.f32.gmra.mrb[0].mxu0 %v950
      %v1117 = vpop.f32.mrb[0].mxu0
      %v1118 = vadd.f32 %v796, %v1117
      %v1119 = vpop.f32.mrb[0].mxu0
      %1120 = vmatprep.mubr.f32.mxu0 0.0
      %1121 = vmatmul.mubr.f32.gmra.mrb[0].mxu0 %v953
      %v1122 = vpop.f32.mrb[0].mxu0
      %v1123 = vadd.f32 %v801, %v1122
      %v1124 = vpop.f32.mrb[0].mxu0
      %1125 = vmatprep.mubr.f32.mxu0 0.0
      %1126 = vmatmul.mubr.f32.gmra.mrb[0].mxu0 %v956
      %v1127 = vpop.f32.mrb[0].mxu0
      %v1128 = vadd.f32 %v806, %v1127
      %v1129 = vpop.f32.mrb[0].mxu0
      %1130 = vmatprep.mubr.f32.mxu0 0.0
      %1131 = vmatmul.mubr.f32.gmra.mrb[0].mxu0 %v959
      %v1132 = vpop.f32.mrb[0].mxu0
      %v1133 = vadd.f32 %v811, %v1132
      %v1134 = vpop.f32.mrb[0].mxu0
      %1135 = vmatprep.mubr.f32.mxu0 0.0
      %1136 = vmatmul.mubr.f32.gmra.mrb[0].mxu0 %v962
      %v1137 = vpop.f32.mrb[0].mxu0
      %v1138 = vadd.f32 %v816, %v1137
      %v1139 = vpop.f32.mrb[0].mxu0
      %1140 = vmatprep.mubr.f32.mxu0 0.0
      %1141 = vmatmul.mubr.f32.gmra.mrb[0].mxu0 %v965
      %v1142 = vpop.f32.mrb[0].mxu0
      %v1143 = vadd.f32 %v821, %v1142
      %v1144 = vpop.f32.mrb[0].mxu0
      %1145 = vmatprep.mubr.f32.mxu0 0.0
      %1146 = vmatmul.mubr.f32.gmra.mrb[0].mxu0 %v968
      %v1147 = vpop.f32.mrb[0].mxu0
      %v1148 = vadd.f32 %v826, %v1147
      %v1149 = vpop.f32.mrb[0].mxu0
      %1150 = vmatprep.mubr.f32.mxu0 0.0
      %1151 = vmatmul.mubr.f32.gmra.mrb[0].mxu0 %v971
      %v1152 = vpop.f32.mrb[0].mxu0
      %v1153 = vadd.f32 %v831, %v1152
      %v1154 = vpop.f32.mrb[0].mxu0
      %1155 = vmatprep.mubr.f32.mxu0 0.0
      %1156 = vmatmul.mubr.f32.gmra.mrb[0].mxu0 %v974
      %v1157 = vpop.f32.mrb[0].mxu0
      %v1158 = vadd.f32 %v836, %v1157
      %v1159 = vpop.f32.mrb[0].mxu0
      %1160 = vmatprep.mubr.f32.mxu0 0.0
      %1161 = vmatmul.mubr.f32.gmra.mrb[0].mxu0 %v977
      %v1162 = vpop.f32.mrb[0].mxu0
      %v1163 = vadd.f32 %v841, %v1162
      %v1164 = vpop.f32.mrb[0].mxu0
      %1165 = vmatprep.mubr.f32.mxu0 0.0
      %1166 = vmatmul.mubr.f32.gmra.mrb[0].mxu0 %v980
      %v1167 = vpop.f32.mrb[0].mxu0
      %v1168 = vadd.f32 %v846, %v1167
      %v1169 = vpop.f32.mrb[0].mxu0
      %1170 = vmatprep.mubr.f32.mxu0 0.0
      %1171 = vmatmul.mubr.f32.gmra.mrb[0].mxu0 %v983
      %v1172 = vpop.f32.mrb[0].mxu0
      %v1173 = vadd.f32 %v851, %v1172
      %v1174 = vpop.f32.mrb[0].mxu0
      %1175 = vmatprep.mubr.f32.mxu0 0.0
      %1176 = vmatmul.mubr.f32.gmra.mrb[0].mxu0 %v986
      %v1177 = vpop.f32.mrb[0].mxu0
      %v1178 = vadd.f32 %v856, %v1177
      %v1179 = vpop.f32.mrb[0].mxu0
      %1180 = vmatprep.mubr.f32.mxu0 0.0
      %1181 = vmatmul.mubr.f32.gmra.mrb[0].mxu0 %v989
      %v1182 = vpop.f32.mrb[0].mxu0
      %v1183 = vadd.f32 %v861, %v1182
      %v1184 = vpop.f32.mrb[0].mxu0
      %1185 = vmatprep.mubr.f32.mxu0 0.0
      %1186 = vmatmul.mubr.f32.gmra.mrb[0].mxu0 %v992
      %v1187 = vpop.f32.mrb[0].mxu0
      %v1188 = vadd.f32 %v866, %v1187
      %v1189 = vpop.f32.mrb[0].mxu0
      %1190 = vmatprep.mubr.f32.mxu0 0.0
      %1191 = vmatmul.mubr.f32.gmra.mrb[0].mxu0 %v995
      %v1192 = vpop.f32.mrb[0].mxu0
      %v1193 = vadd.f32 %v871, %v1192
      %v1194 = vpop.f32.mrb[0].mxu0
      %1195 = vmatprep.mubr.f32.mxu0 0.0
      %1196 = vmatmul.mubr.f32.gmra.mrb[0].mxu0 %v998
      %v1197 = vpop.f32.mrb[0].mxu0
      %v1198 = vadd.f32 %v876, %v1197
      %v1199 = vpop.f32.mrb[0].mxu0
      %1200 = vmatprep.mubr.f32.mxu0 0.0
      %1201 = vmatmul.mubr.f32.gmra.mrb[0].mxu0 %v1001
      %v1202 = vpop.f32.mrb[0].mxu0
      %v1203 = vadd.f32 %v881, %v1202
      %v1204 = vpop.f32.mrb[0].mxu0
      %1205 = vmatprep.mubr.f32.mxu0 0.0
      %1206 = vmatmul.mubr.f32.gmra.mrb[0].mxu0 %v1004
      %v1207 = vpop.f32.mrb[0].mxu0
      %v1208 = vadd.f32 %v886, %v1207
      %v1209 = vpop.f32.mrb[0].mxu0
      %1210 = vmatprep.mubr.f32.mxu0 0.0
      %1211 = vmatmul.mubr.f32.gmra.mrb[0].mxu0 %v1007
      %v1212 = vpop.f32.mrb[0].mxu0
      %v1213 = vadd.f32 %v891, %v1212
      %v1214 = vpop.f32.mrb[0].mxu0
      %1215 = vmatprep.mubr.f32.mxu0 0.0
      %1216 = vmatmul.mubr.f32.gmra.mrb[0].mxu0 %v1010
      %v1217 = vpop.f32.mrb[0].mxu0
      %v1218 = vadd.f32 %v896, %v1217
      %v1219 = vpop.f32.mrb[0].mxu0
      %1220 = vmatprep.mubr.f32.mxu0 0.0
      %1221 = vmatmul.mubr.f32.gmra.mrb[0].mxu0 %v1013
      %v1222 = vpop.f32.mrb[0].mxu0
      %v1223 = vadd.f32 %v901, %v1222
      %v1224 = vpop.f32.mrb[0].mxu0
      %1225 = vmatprep.mubr.f32.mxu0 0.0
      %1226 = vmatmul.mubr.f32.gmra.mrb[0].mxu0 %v1016
      %v1227 = vpop.f32.mrb[0].mxu0
      %v1228 = vadd.f32 %v906, %v1227
      %v1229 = vpop.f32.mrb[0].mxu0
      %1230 = vmatprep.mubr.f32.mxu0 0.0
      %1231 = vmatmul.mubr.f32.gmra.mrb[0].mxu0 %v1019
      %v1232 = vpop.f32.mrb[0].mxu0
      %v1233 = vadd.f32 %v911, %v1232
      %v1234 = vpop.f32.mrb[0].mxu0
      %1235 = vmatprep.mubr.f32.mxu0 0.0
      %1236 = vmatmul.mubr.f32.gmra.mrb[0].mxu0 %v1022
      %v1237 = vpop.f32.mrb[0].mxu0
      %v1238 = vadd.f32 %v916, %v1237
      %v1239 = vpop.f32.mrb[0].mxu0
      %1240 = vmatprep.mubr.f32.mxu0 0.0
      %1241 = vmatmul.mubr.f32.gmra.mrb[0].mxu0 %v1025
      %v1242 = vpop.f32.mrb[0].mxu0
      %v1243 = vadd.f32 %v921, %v1242
      %v1244 = vpop.f32.mrb[0].mxu0
      %1245 = vmatprep.mubr.f32.mxu0 0.0
      %1246 = vmatmul.mubr.f32.gmra.mrb[0].mxu0 %v1028
      %v1247 = vpop.f32.mrb[0].mxu0
      %v1248 = vadd.f32 %v926, %v1247
      %v1249 = vpop.f32.mrb[0].mxu0
      %1250 = vmatprep.mubr.f32.mxu0 0.0
      %1251 = vmatmul.mubr.f32.gmra.mrb[0].mxu0 %v1031
      %v1252 = vpop.f32.mrb[0].mxu0
      %v1253 = vadd.f32 %v931, %v1252
      %v1254 = vpop.f32.mrb[0].mxu0
      %1255 = vmatprep.mubr.f32.mxu0 0.0
      %1256 = vmatmul.mubr.f32.gmra.mrb[0].mxu0 %v1034
      %v1257 = vpop.f32.mrb[0].mxu0
      %v1258 = vadd.f32 %v936, %v1257
      %v1259 = vpop.f32.mrb[0].mxu0
      %1260 = vdwg.mxu0
      %v1261 = vld [vmem:[%s5] sm:$0x7]
      %v1263 = vsel %vm613, %v544, 0
      %v1266 = vsel %vm613, %v545, 0
      %v1269 = vsel %vm613, %v546, 0
      %v1272 = vsel %vm613, %v547, 0
      %v1275 = vsel %vm613, %v548, 0
      %v1278 = vsel %vm613, %v549, 0
      %v1281 = vsel %vm613, %v550, 0
      %v1284 = vsel %vm613, %v551, 0
      %v1287 = vsel %vm613, %v552, 0
      %v1290 = vsel %vm613, %v553, 0
      %v1293 = vsel %vm613, %v554, 0
      %v1296 = vsel %vm613, %v555, 0
      %v1299 = vsel %vm613, %v556, 0
      %v1302 = vsel %vm613, %v557, 0
      %v1305 = vsel %vm613, %v558, 0
      %v1308 = vsel %vm613, %v559, 0
      %v1311 = vsel %vm613, %v560, 0
      %v1314 = vsel %vm613, %v561, 0
      %v1317 = vsel %vm613, %v562, 0
      %v1320 = vsel %vm613, %v563, 0
      %v1323 = vsel %vm613, %v564, 0
      %v1326 = vsel %vm613, %v565, 0
      %v1329 = vsel %vm613, %v566, 0
      %v1332 = vsel %vm613, %v567, 0
      %v1335 = vsel %vm613, %v568, 0
      %v1338 = vsel %vm613, %v569, 0
      %v1341 = vsel %vm613, %v570, 0
      %v1344 = vsel %vm613, %v571, 0
      %v1347 = vsel %vm613, %v572, 0
      %v1350 = vsel %vm613, %v573, 0
      %v1353 = vsel %vm613, %v574, 0
      %v1356 = vsel %vm613, %v575, 0
      %v1359 = vsel %vm710, %v1261, 0
      %1361 = vmatprep.subr.mxu0 0.0
      %1362 = vmatpush1.msra.mxu0 %v1359
      %1363 = vmatprep.subr.mxu0 0.0
      %1364 = vmatpush1.msra.mxu0 0.0
      %1365 = vmatprep.subr.mxu0 0.0
      %1366 = vmatpush1.msra.mxu0 0.0
      %1367 = vmatprep.subr.mxu0 0.0
      %1368 = vmatpush1.msra.mxu0 0.0
      %1369 = vmatprep.subr.mxu0 0.0
      %1370 = vmatpush1.msra.mxu0 0.0
      %1371 = vmatprep.subr.mxu0 0.0
      %1372 = vmatpush1.msra.mxu0 0.0
      %1373 = vmatprep.subr.mxu0 0.0
      %1374 = vmatpush1.msra.mxu0 0.0
      %1375 = vmatprep.subr.mxu0 0.0
      %1376 = vmatpush1.msra.mxu0 0.0
      %1377 = vmatprep.subr.mxu0 0.0
      %1378 = vmatpush1.msra.mxu0 0.0
      %1379 = vmatprep.subr.mxu0 0.0
      %1380 = vmatpush1.msra.mxu0 0.0
      %1381 = vmatprep.subr.mxu0 0.0
      %1382 = vmatpush1.msra.mxu0 0.0
      %1383 = vmatprep.subr.mxu0 0.0
      %1384 = vmatpush1.msra.mxu0 0.0
      %1385 = vmatprep.subr.mxu0 0.0
      %1386 = vmatpush1.msra.mxu0 0.0
      %1387 = vmatprep.subr.mxu0 0.0
      %1388 = vmatpush1.msra.mxu0 0.0
      %1389 = vmatprep.subr.mxu0 0.0
      %1390 = vmatpush1.msra.mxu0 0.0
      %1391 = vmatprep.subr.mxu0 0.0
      %1392 = vmatpush1.msra.mxu0 0.0
      %1393 = vmatprep.subr.mxu0 0.0
      %1394 = vmatpush1.msra.mxu0 0.0
      %1395 = vmatprep.subr.mxu0 0.0
      %1396 = vmatpush1.msra.mxu0 0.0
      %1397 = vmatprep.subr.mxu0 0.0
      %1398 = vmatpush1.msra.mxu0 0.0
      %1399 = vmatprep.subr.mxu0 0.0
      %1400 = vmatpush1.msra.mxu0 0.0
      %1401 = vmatprep.subr.mxu0 0.0
      %1402 = vmatpush1.msra.mxu0 0.0
      %1403 = vmatprep.subr.mxu0 0.0
      %1404 = vmatpush1.msra.mxu0 0.0
      %1405 = vmatprep.subr.mxu0 0.0
      %1406 = vmatpush1.msra.mxu0 0.0
      %1407 = vmatprep.subr.mxu0 0.0
      %1408 = vmatpush1.msra.mxu0 0.0
      %1409 = vmatprep.subr.mxu0 0.0
      %1410 = vmatpush1.msra.mxu0 0.0
      %1411 = vmatprep.subr.mxu0 0.0
      %1412 = vmatpush1.msra.mxu0 0.0
      %1413 = vmatprep.subr.mxu0 0.0
      %1414 = vmatpush1.msra.mxu0 0.0
      %1415 = vmatprep.subr.mxu0 0.0
      %1416 = vmatpush1.msra.mxu0 0.0
      %1417 = vmatprep.subr.mxu0 0.0
      %1418 = vmatpush1.msra.mxu0 0.0
      %1419 = vmatprep.subr.mxu0 0.0
      %1420 = vmatpush1.msra.mxu0 0.0
      %1421 = vmatprep.subr.mxu0 0.0
      %1422 = vmatpush1.msra.mxu0 0.0
      %1423 = vmatprep.subr.mxu0 0.0
      %1424 = vmatpush1.msra.mxu0 0.0
      %1425 = vmatprep.mubr.f32.mxu0 0.0
      %1426 = vmatmul.mubr.f32.gmra.mrb[0].mxu0 %v1263
      %v1427 = vpop.f32.mrb[0].mxu0
      %v1428 = vadd.f32 0.0, %v1427
      %v1429 = vpop.f32.mrb[0].mxu0
      %1430 = vmatprep.mubr.f32.mxu0 0.0
      %1431 = vmatmul.mubr.f32.gmra.mrb[0].mxu0 %v1266
      %v1432 = vpop.f32.mrb[0].mxu0
      %v1433 = vadd.f32 0.0, %v1432
      %v1434 = vpop.f32.mrb[0].mxu0
      %1435 = vmatprep.mubr.f32.mxu0 0.0
      %1436 = vmatmul.mubr.f32.gmra.mrb[0].mxu0 %v1269
      %v1437 = vpop.f32.mrb[0].mxu0
      %v1438 = vadd.f32 0.0, %v1437
      %v1439 = vpop.f32.mrb[0].mxu0
      %1440 = vmatprep.mubr.f32.mxu0 0.0
      %1441 = vmatmul.mubr.f32.gmra.mrb[0].mxu0 %v1272
      %v1442 = vpop.f32.mrb[0].mxu0
      %v1443 = vadd.f32 0.0, %v1442
      %v1444 = vpop.f32.mrb[0].mxu0
      %1445 = vmatprep.mubr.f32.mxu0 0.0
      %1446 = vmatmul.mubr.f32.gmra.mrb[0].mxu0 %v1275
      %v1447 = vpop.f32.mrb[0].mxu0
      %v1448 = vadd.f32 0.0, %v1447
      %v1449 = vpop.f32.mrb[0].mxu0
      %1450 = vmatprep.mubr.f32.mxu0 0.0
      %1451 = vmatmul.mubr.f32.gmra.mrb[0].mxu0 %v1278
      %v1452 = vpop.f32.mrb[0].mxu0
      %v1453 = vadd.f32 0.0, %v1452
      %v1454 = vpop.f32.mrb[0].mxu0
      %1455 = vmatprep.mubr.f32.mxu0 0.0
      %1456 = vmatmul.mubr.f32.gmra.mrb[0].mxu0 %v1281
      %v1457 = vpop.f32.mrb[0].mxu0
      %v1458 = vadd.f32 0.0, %v1457
      %v1459 = vpop.f32.mrb[0].mxu0
      %1460 = vmatprep.mubr.f32.mxu0 0.0
      %1461 = vmatmul.mubr.f32.gmra.mrb[0].mxu0 %v1284
      %v1462 = vpop.f32.mrb[0].mxu0
      %v1463 = vadd.f32 0.0, %v1462
      %v1464 = vpop.f32.mrb[0].mxu0
      %1465 = vmatprep.mubr.f32.mxu0 0.0
      %1466 = vmatmul.mubr.f32.gmra.mrb[0].mxu0 %v1287
      %v1467 = vpop.f32.mrb[0].mxu0
      %v1468 = vadd.f32 0.0, %v1467
      %v1469 = vpop.f32.mrb[0].mxu0
      %1470 = vmatprep.mubr.f32.mxu0 0.0
      %1471 = vmatmul.mubr.f32.gmra.mrb[0].mxu0 %v1290
      %v1472 = vpop.f32.mrb[0].mxu0
      %v1473 = vadd.f32 0.0, %v1472
      %v1474 = vpop.f32.mrb[0].mxu0
      %1475 = vmatprep.mubr.f32.mxu0 0.0
      %1476 = vmatmul.mubr.f32.gmra.mrb[0].mxu0 %v1293
      %v1477 = vpop.f32.mrb[0].mxu0
      %v1478 = vadd.f32 0.0, %v1477
      %v1479 = vpop.f32.mrb[0].mxu0
      %1480 = vmatprep.mubr.f32.mxu0 0.0
      %1481 = vmatmul.mubr.f32.gmra.mrb[0].mxu0 %v1296
      %v1482 = vpop.f32.mrb[0].mxu0
      %v1483 = vadd.f32 0.0, %v1482
      %v1484 = vpop.f32.mrb[0].mxu0
      %1485 = vmatprep.mubr.f32.mxu0 0.0
      %1486 = vmatmul.mubr.f32.gmra.mrb[0].mxu0 %v1299
      %v1487 = vpop.f32.mrb[0].mxu0
      %v1488 = vadd.f32 0.0, %v1487
      %v1489 = vpop.f32.mrb[0].mxu0
      %1490 = vmatprep.mubr.f32.mxu0 0.0
      %1491 = vmatmul.mubr.f32.gmra.mrb[0].mxu0 %v1302
      %v1492 = vpop.f32.mrb[0].mxu0
      %v1493 = vadd.f32 0.0, %v1492
      %v1494 = vpop.f32.mrb[0].mxu0
      %1495 = vmatprep.mubr.f32.mxu0 0.0
      %1496 = vmatmul.mubr.f32.gmra.mrb[0].mxu0 %v1305
      %v1497 = vpop.f32.mrb[0].mxu0
      %v1498 = vadd.f32 0.0, %v1497
      %v1499 = vpop.f32.mrb[0].mxu0
      %1500 = vmatprep.mubr.f32.mxu0 0.0
      %1501 = vmatmul.mubr.f32.gmra.mrb[0].mxu0 %v1308
      %v1502 = vpop.f32.mrb[0].mxu0
      %v1503 = vadd.f32 0.0, %v1502
      %v1504 = vpop.f32.mrb[0].mxu0
      %1505 = vmatprep.mubr.f32.mxu0 0.0
      %1506 = vmatmul.mubr.f32.gmra.mrb[0].mxu0 %v1311
      %v1507 = vpop.f32.mrb[0].mxu0
      %v1508 = vadd.f32 0.0, %v1507
      %v1509 = vpop.f32.mrb[0].mxu0
      %1510 = vmatprep.mubr.f32.mxu0 0.0
      %1511 = vmatmul.mubr.f32.gmra.mrb[0].mxu0 %v1314
      %v1512 = vpop.f32.mrb[0].mxu0
      %v1513 = vadd.f32 0.0, %v1512
      %v1514 = vpop.f32.mrb[0].mxu0
      %1515 = vmatprep.mubr.f32.mxu0 0.0
      %1516 = vmatmul.mubr.f32.gmra.mrb[0].mxu0 %v1317
      %v1517 = vpop.f32.mrb[0].mxu0
      %v1518 = vadd.f32 0.0, %v1517
      %v1519 = vpop.f32.mrb[0].mxu0
      %1520 = vmatprep.mubr.f32.mxu0 0.0
      %1521 = vmatmul.mubr.f32.gmra.mrb[0].mxu0 %v1320
      %v1522 = vpop.f32.mrb[0].mxu0
      %v1523 = vadd.f32 0.0, %v1522
      %v1524 = vpop.f32.mrb[0].mxu0
      %1525 = vmatprep.mubr.f32.mxu0 0.0
      %1526 = vmatmul.mubr.f32.gmra.mrb[0].mxu0 %v1323
      %v1527 = vpop.f32.mrb[0].mxu0
      %v1528 = vadd.f32 0.0, %v1527
      %v1529 = vpop.f32.mrb[0].mxu0
      %1530 = vmatprep.mubr.f32.mxu0 0.0
      %1531 = vmatmul.mubr.f32.gmra.mrb[0].mxu0 %v1326
      %v1532 = vpop.f32.mrb[0].mxu0
      %v1533 = vadd.f32 0.0, %v1532
      %v1534 = vpop.f32.mrb[0].mxu0
      %1535 = vmatprep.mubr.f32.mxu0 0.0
      %1536 = vmatmul.mubr.f32.gmra.mrb[0].mxu0 %v1329
      %v1537 = vpop.f32.mrb[0].mxu0
      %v1538 = vadd.f32 0.0, %v1537
      %v1539 = vpop.f32.mrb[0].mxu0
      %1540 = vmatprep.mubr.f32.mxu0 0.0
      %1541 = vmatmul.mubr.f32.gmra.mrb[0].mxu0 %v1332
      %v1542 = vpop.f32.mrb[0].mxu0
      %v1543 = vadd.f32 0.0, %v1542
      %v1544 = vpop.f32.mrb[0].mxu0
      %1545 = vmatprep.mubr.f32.mxu0 0.0
      %1546 = vmatmul.mubr.f32.gmra.mrb[0].mxu0 %v1335
      %v1547 = vpop.f32.mrb[0].mxu0
      %v1548 = vadd.f32 0.0, %v1547
      %v1549 = vpop.f32.mrb[0].mxu0
      %1550 = vmatprep.mubr.f32.mxu0 0.0
      %1551 = vmatmul.mubr.f32.gmra.mrb[0].mxu0 %v1338
      %v1552 = vpop.f32.mrb[0].mxu0
      %v1553 = vadd.f32 0.0, %v1552
      %v1554 = vpop.f32.mrb[0].mxu0
      %1555 = vmatprep.mubr.f32.mxu0 0.0
      %1556 = vmatmul.mubr.f32.gmra.mrb[0].mxu0 %v1341
      %v1557 = vpop.f32.mrb[0].mxu0
      %v1558 = vadd.f32 0.0, %v1557
      %v1559 = vpop.f32.mrb[0].mxu0
      %1560 = vmatprep.mubr.f32.mxu0 0.0
      %1561 = vmatmul.mubr.f32.gmra.mrb[0].mxu0 %v1344
      %v1562 = vpop.f32.mrb[0].mxu0
      %v1563 = vadd.f32 0.0, %v1562
      %v1564 = vpop.f32.mrb[0].mxu0
      %1565 = vmatprep.mubr.f32.mxu0 0.0
      %1566 = vmatmul.mubr.f32.gmra.mrb[0].mxu0 %v1347
      %v1567 = vpop.f32.mrb[0].mxu0
      %v1568 = vadd.f32 0.0, %v1567
      %v1569 = vpop.f32.mrb[0].mxu0
      %1570 = vmatprep.mubr.f32.mxu0 0.0
      %1571 = vmatmul.mubr.f32.gmra.mrb[0].mxu0 %v1350
      %v1572 = vpop.f32.mrb[0].mxu0
      %v1573 = vadd.f32 0.0, %v1572
      %v1574 = vpop.f32.mrb[0].mxu0
      %1575 = vmatprep.mubr.f32.mxu0 0.0
      %1576 = vmatmul.mubr.f32.gmra.mrb[0].mxu0 %v1353
      %v1577 = vpop.f32.mrb[0].mxu0
      %v1578 = vadd.f32 0.0, %v1577
      %v1579 = vpop.f32.mrb[0].mxu0
      %1580 = vmatprep.mubr.f32.mxu0 0.0
      %1581 = vmatmul.mubr.f32.gmra.mrb[0].mxu0 %v1356
      %v1582 = vpop.f32.mrb[0].mxu0
      %v1583 = vadd.f32 0.0, %v1582
      %v1584 = vpop.f32.mrb[0].mxu0
      %1585 = vdwg.mxu0
      %v1586 = vadd.f32 %v1103, %v1428
      %v1587 = vadd.f32 %v1108, %v1433
      %v1588 = vadd.f32 %v1113, %v1438
      %v1589 = vadd.f32 %v1118, %v1443
      %v1590 = vadd.f32 %v1123, %v1448
      %v1591 = vadd.f32 %v1128, %v1453
      %v1592 = vadd.f32 %v1133, %v1458
      %v1593 = vadd.f32 %v1138, %v1463
      %v1594 = vadd.f32 %v1143, %v1468
      %v1595 = vadd.f32 %v1148, %v1473
      %v1596 = vadd.f32 %v1153, %v1478
      %v1597 = vadd.f32 %v1158, %v1483
      %v1598 = vadd.f32 %v1163, %v1488
      %v1599 = vadd.f32 %v1168, %v1493
      %v1600 = vadd.f32 %v1173, %v1498
      %v1601 = vadd.f32 %v1178, %v1503
      %v1602 = vadd.f32 %v1183, %v1508
      %v1603 = vadd.f32 %v1188, %v1513
      %v1604 = vadd.f32 %v1193, %v1518
      %v1605 = vadd.f32 %v1198, %v1523
      %v1606 = vadd.f32 %v1203, %v1528
      %v1607 = vadd.f32 %v1208, %v1533
      %v1608 = vadd.f32 %v1213, %v1538
      %v1609 = vadd.f32 %v1218, %v1543
      %v1610 = vadd.f32 %v1223, %v1548
      %v1611 = vadd.f32 %v1228, %v1553
      %v1612 = vadd.f32 %v1233, %v1558
      %v1613 = vadd.f32 %v1238, %v1563
      %v1614 = vadd.f32 %v1243, %v1568
      %v1615 = vadd.f32 %v1248, %v1573
      %v1616 = vadd.f32 %v1253, %v1578
      %v1617 = vadd.f32 %v1258, %v1583
      %v1618 = vld [vmem:[%s501] sm:$0x1]
      %v1620 = vlaneseq
      %v1621 = vshrl.u32 %v1620, 7
      %v1622 = vsub.s32 0, %v1621
      %v1623 = vrot.slane %v1618, %v1622
      %v1625 = vadd.f32 %v1586, %v1623
      %v1626 = vadd.f32 %v1587, %v1623
      %v1627 = vadd.f32 %v1588, %v1623
      %v1628 = vadd.f32 %v1589, %v1623
      %v1629 = vadd.f32 %v1590, %v1623
      %v1630 = vadd.f32 %v1591, %v1623
      %v1631 = vadd.f32 %v1592, %v1623
      %v1632 = vadd.f32 %v1593, %v1623
      %v1633 = vadd.f32 %v1594, %v1623
      %v1634 = vadd.f32 %v1595, %v1623
      %v1635 = vadd.f32 %v1596, %v1623
      %v1636 = vadd.f32 %v1597, %v1623
      %v1637 = vadd.f32 %v1598, %v1623
      %v1638 = vadd.f32 %v1599, %v1623
      %v1639 = vadd.f32 %v1600, %v1623
      %v1640 = vadd.f32 %v1601, %v1623
      %v1641 = vadd.f32 %v1602, %v1623
      %v1642 = vadd.f32 %v1603, %v1623
      %v1643 = vadd.f32 %v1604, %v1623
      %v1644 = vadd.f32 %v1605, %v1623
      %v1645 = vadd.f32 %v1606, %v1623
      %v1646 = vadd.f32 %v1607, %v1623
      %v1647 = vadd.f32 %v1608, %v1623
      %v1648 = vadd.f32 %v1609, %v1623
      %v1649 = vadd.f32 %v1610, %v1623
      %v1650 = vadd.f32 %v1611, %v1623
      %v1651 = vadd.f32 %v1612, %v1623
      %v1652 = vadd.f32 %v1613, %v1623
      %v1653 = vadd.f32 %v1614, %v1623
      %v1654 = vadd.f32 %v1615, %v1623
      %v1655 = vadd.f32 %v1616, %v1623
      %v1656 = vadd.f32 %v1617, %v1623
      %v1657 = vmax.f32 %v1625, 0.0
      %v1658 = vmax.f32 %v1626, 0.0
      %v1659 = vmax.f32 %v1627, 0.0
      %v1660 = vmax.f32 %v1628, 0.0
      %v1661 = vmax.f32 %v1629, 0.0
      %v1662 = vmax.f32 %v1630, 0.0
      %v1663 = vmax.f32 %v1631, 0.0
      %v1664 = vmax.f32 %v1632, 0.0
      %v1665 = vmax.f32 %v1633, 0.0
      %v1666 = vmax.f32 %v1634, 0.0
      %v1667 = vmax.f32 %v1635, 0.0
      %v1668 = vmax.f32 %v1636, 0.0
      %v1669 = vmax.f32 %v1637, 0.0
      %v1670 = vmax.f32 %v1638, 0.0
      %v1671 = vmax.f32 %v1639, 0.0
      %v1672 = vmax.f32 %v1640, 0.0
      %v1673 = vmax.f32 %v1641, 0.0
      %v1674 = vmax.f32 %v1642, 0.0
      %v1675 = vmax.f32 %v1643, 0.0
      %v1676 = vmax.f32 %v1644, 0.0
      %v1677 = vmax.f32 %v1645, 0.0
      %v1678 = vmax.f32 %v1646, 0.0
      %v1679 = vmax.f32 %v1647, 0.0
      %v1680 = vmax.f32 %v1648, 0.0
      %v1681 = vmax.f32 %v1649, 0.0
      %v1682 = vmax.f32 %v1650, 0.0
      %v1683 = vmax.f32 %v1651, 0.0
      %v1684 = vmax.f32 %v1652, 0.0
      %v1685 = vmax.f32 %v1653, 0.0
      %v1686 = vmax.f32 %v1654, 0.0
      %v1687 = vmax.f32 %v1655, 0.0
      %v1688 = vmax.f32 %v1656, 0.0
      %v1689 = vld [vmem:[%s7] sm:$0xff]
      %v1690 = vld [vmem:[%s7 + $0x8] sm:$0xff]
      %v1691 = vld [vmem:[%s7 + $0x10] sm:$0xff]
      %v1692 = vld [vmem:[%s7 + $0x18] sm:$0xff]
      %v1693 = vld [vmem:[%s7 + $0x20] sm:$0xff]
      %v1694 = vld [vmem:[%s7 + $0x28] sm:$0xff]
      %v1695 = vld [vmem:[%s7 + $0x30] sm:$0xff]
      %v1696 = vld [vmem:[%s7 + $0x38] sm:$0xff]
      %v1697 = vld [vmem:[%s8] sm:$0x1]
      %v1699 = vlaneseq
      %v1700 = vshrl.u32 %v1699, 7
      %v1701 = vsub.s32 0, %v1700
      %v1702 = vrot.slane %v1697, %v1701
      %vm1704 = vcmask 523264
      %v1706 = vsel %vm1704, %v1657, 0
      %v1709 = vsel %vm1704, %v1658, 0
      %v1712 = vsel %vm1704, %v1659, 0
      %v1715 = vsel %vm1704, %v1660, 0
      %v1718 = vsel %vm1704, %v1661, 0
      %v1721 = vsel %vm1704, %v1662, 0
      %v1724 = vsel %vm1704, %v1663, 0
      %v1727 = vsel %vm1704, %v1664, 0
      %v1730 = vsel %vm1704, %v1665, 0
      %v1733 = vsel %vm1704, %v1666, 0
      %v1736 = vsel %vm1704, %v1667, 0
      %v1739 = vsel %vm1704, %v1668, 0
      %v1742 = vsel %vm1704, %v1669, 0
      %v1745 = vsel %vm1704, %v1670, 0
      %v1748 = vsel %vm1704, %v1671, 0
      %v1751 = vsel %vm1704, %v1672, 0
      %v1754 = vsel %vm1704, %v1673, 0
      %v1757 = vsel %vm1704, %v1674, 0
      %v1760 = vsel %vm1704, %v1675, 0
      %v1763 = vsel %vm1704, %v1676, 0
      %v1766 = vsel %vm1704, %v1677, 0
      %v1769 = vsel %vm1704, %v1678, 0
      %v1772 = vsel %vm1704, %v1679, 0
      %v1775 = vsel %vm1704, %v1680, 0
      %v1778 = vsel %vm1704, %v1681, 0
      %v1781 = vsel %vm1704, %v1682, 0
      %v1784 = vsel %vm1704, %v1683, 0
      %v1787 = vsel %vm1704, %v1684, 0
      %v1790 = vsel %vm1704, %v1685, 0
      %v1793 = vsel %vm1704, %v1686, 0
      %v1796 = vsel %vm1704, %v1687, 0
      %v1799 = vsel %vm1704, %v1688, 0
      %1801 = vmatprep.subr.mxu0 0.0
      %1802 = vmatpush1.msra.mxu0 %v1689
      %1803 = vmatprep.subr.mxu0 0.0
      %1804 = vmatpush1.msra.mxu0 %v1690
      %1805 = vmatprep.subr.mxu0 0.0
      %1806 = vmatpush1.msra.mxu0 %v1691
      %1807 = vmatprep.subr.mxu0 0.0
      %1808 = vmatpush1.msra.mxu0 %v1692
      %1809 = vmatprep.subr.mxu0 0.0
      %1810 = vmatpush1.msra.mxu0 %v1693
      %1811 = vmatprep.subr.mxu0 0.0
      %1812 = vmatpush1.msra.mxu0 %v1694
      %1813 = vmatprep.subr.mxu0 0.0
      %1814 = vmatpush1.msra.mxu0 %v1695
      %1815 = vmatprep.subr.mxu0 0.0
      %1816 = vmatpush1.msra.mxu0 %v1696
      %1817 = vmatprep.subr.mxu0 0.0
      %1818 = vmatpush1.msra.mxu0 0.0
      %1819 = vmatprep.subr.mxu0 0.0
      %1820 = vmatpush1.msra.mxu0 0.0
      %1821 = vmatprep.subr.mxu0 0.0
      %1822 = vmatpush1.msra.mxu0 0.0
      %1823 = vmatprep.subr.mxu0 0.0
      %1824 = vmatpush1.msra.mxu0 0.0
      %1825 = vmatprep.subr.mxu0 0.0
      %1826 = vmatpush1.msra.mxu0 0.0
      %1827 = vmatprep.subr.mxu0 0.0
      %1828 = vmatpush1.msra.mxu0 0.0
      %1829 = vmatprep.subr.mxu0 0.0
      %1830 = vmatpush1.msra.mxu0 0.0
      %1831 = vmatprep.subr.mxu0 0.0
      %1832 = vmatpush1.msra.mxu0 0.0
      %1833 = vmatprep.subr.mxu0 0.0
      %1834 = vmatpush1.msra.mxu0 0.0
      %1835 = vmatprep.subr.mxu0 0.0
      %1836 = vmatpush1.msra.mxu0 0.0
      %1837 = vmatprep.subr.mxu0 0.0
      %1838 = vmatpush1.msra.mxu0 0.0
      %1839 = vmatprep.subr.mxu0 0.0
      %1840 = vmatpush1.msra.mxu0 0.0
      %1841 = vmatprep.subr.mxu0 0.0
      %1842 = vmatpush1.msra.mxu0 0.0
      %1843 = vmatprep.subr.mxu0 0.0
      %1844 = vmatpush1.msra.mxu0 0.0
      %1845 = vmatprep.subr.mxu0 0.0
      %1846 = vmatpush1.msra.mxu0 0.0
      %1847 = vmatprep.subr.mxu0 0.0
      %1848 = vmatpush1.msra.mxu0 0.0
      %1849 = vmatprep.subr.mxu0 0.0
      %1850 = vmatpush1.msra.mxu0 0.0
      %1851 = vmatprep.subr.mxu0 0.0
      %1852 = vmatpush1.msra.mxu0 0.0
      %1853 = vmatprep.subr.mxu0 0.0
      %1854 = vmatpush1.msra.mxu0 0.0
      %1855 = vmatprep.subr.mxu0 0.0
      %1856 = vmatpush1.msra.mxu0 0.0
      %1857 = vmatprep.subr.mxu0 0.0
      %1858 = vmatpush1.msra.mxu0 0.0
      %1859 = vmatprep.subr.mxu0 0.0
      %1860 = vmatpush1.msra.mxu0 0.0
      %1861 = vmatprep.subr.mxu0 0.0
      %1862 = vmatpush1.msra.mxu0 0.0
      %1863 = vmatprep.subr.mxu0 0.0
      %1864 = vmatpush1.msra.mxu0 0.0
      %1865 = vmatprep.mubr.f32.mxu0 0.0
      %1866 = vmatmul.mubr.f32.gmra.mrb[0].mxu0 %v1706
      %v1867 = vpop.f32.mrb[0].mxu0
      %v1868 = vadd.f32 %v1702, %v1867
      %v1869 = vpop.f32.mrb[0].mxu0
      %1870 = vmatprep.mubr.f32.mxu0 0.0
      %1871 = vmatmul.mubr.f32.gmra.mrb[0].mxu0 %v1709
      %v1872 = vpop.f32.mrb[0].mxu0
      %v1873 = vadd.f32 %v1702, %v1872
      %v1874 = vpop.f32.mrb[0].mxu0
      %1875 = vmatprep.mubr.f32.mxu0 0.0
      %1876 = vmatmul.mubr.f32.gmra.mrb[0].mxu0 %v1712
      %v1877 = vpop.f32.mrb[0].mxu0
      %v1878 = vadd.f32 %v1702, %v1877
      %v1879 = vpop.f32.mrb[0].mxu0
      %1880 = vmatprep.mubr.f32.mxu0 0.0
      %1881 = vmatmul.mubr.f32.gmra.mrb[0].mxu0 %v1715
      %v1882 = vpop.f32.mrb[0].mxu0
      %v1883 = vadd.f32 %v1702, %v1882
      %v1884 = vpop.f32.mrb[0].mxu0
      %1885 = vmatprep.mubr.f32.mxu0 0.0
      %1886 = vmatmul.mubr.f32.gmra.mrb[0].mxu0 %v1718
      %v1887 = vpop.f32.mrb[0].mxu0
      %v1888 = vadd.f32 %v1702, %v1887
      %v1889 = vpop.f32.mrb[0].mxu0
      %1890 = vmatprep.mubr.f32.mxu0 0.0
      %1891 = vmatmul.mubr.f32.gmra.mrb[0].mxu0 %v1721
      %v1892 = vpop.f32.mrb[0].mxu0
      %v1893 = vadd.f32 %v1702, %v1892
      %v1894 = vpop.f32.mrb[0].mxu0
      %1895 = vmatprep.mubr.f32.mxu0 0.0
      %1896 = vmatmul.mubr.f32.gmra.mrb[0].mxu0 %v1724
      %v1897 = vpop.f32.mrb[0].mxu0
      %v1898 = vadd.f32 %v1702, %v1897
      %v1899 = vpop.f32.mrb[0].mxu0
      %1900 = vmatprep.mubr.f32.mxu0 0.0
      %1901 = vmatmul.mubr.f32.gmra.mrb[0].mxu0 %v1727
      %v1902 = vpop.f32.mrb[0].mxu0
      %v1903 = vadd.f32 %v1702, %v1902
      %v1904 = vpop.f32.mrb[0].mxu0
      %1905 = vmatprep.mubr.f32.mxu0 0.0
      %1906 = vmatmul.mubr.f32.gmra.mrb[0].mxu0 %v1730
      %v1907 = vpop.f32.mrb[0].mxu0
      %v1908 = vadd.f32 %v1702, %v1907
      %v1909 = vpop.f32.mrb[0].mxu0
      %1910 = vmatprep.mubr.f32.mxu0 0.0
      %1911 = vmatmul.mubr.f32.gmra.mrb[0].mxu0 %v1733
      %v1912 = vpop.f32.mrb[0].mxu0
      %v1913 = vadd.f32 %v1702, %v1912
      %v1914 = vpop.f32.mrb[0].mxu0
      %1915 = vmatprep.mubr.f32.mxu0 0.0
      %1916 = vmatmul.mubr.f32.gmra.mrb[0].mxu0 %v1736
      %v1917 = vpop.f32.mrb[0].mxu0
      %v1918 = vadd.f32 %v1702, %v1917
      %v1919 = vpop.f32.mrb[0].mxu0
      %1920 = vmatprep.mubr.f32.mxu0 0.0
      %1921 = vmatmul.mubr.f32.gmra.mrb[0].mxu0 %v1739
      %v1922 = vpop.f32.mrb[0].mxu0
      %v1923 = vadd.f32 %v1702, %v1922
      %v1924 = vpop.f32.mrb[0].mxu0
      %1925 = vmatprep.mubr.f32.mxu0 0.0
      %1926 = vmatmul.mubr.f32.gmra.mrb[0].mxu0 %v1742
      %v1927 = vpop.f32.mrb[0].mxu0
      %v1928 = vadd.f32 %v1702, %v1927
      %v1929 = vpop.f32.mrb[0].mxu0
      %1930 = vmatprep.mubr.f32.mxu0 0.0
      %1931 = vmatmul.mubr.f32.gmra.mrb[0].mxu0 %v1745
      %v1932 = vpop.f32.mrb[0].mxu0
      %v1933 = vadd.f32 %v1702, %v1932
      %v1934 = vpop.f32.mrb[0].mxu0
      %1935 = vmatprep.mubr.f32.mxu0 0.0
      %1936 = vmatmul.mubr.f32.gmra.mrb[0].mxu0 %v1748
      %v1937 = vpop.f32.mrb[0].mxu0
      %v1938 = vadd.f32 %v1702, %v1937
      %v1939 = vpop.f32.mrb[0].mxu0
      %1940 = vmatprep.mubr.f32.mxu0 0.0
      %1941 = vmatmul.mubr.f32.gmra.mrb[0].mxu0 %v1751
      %v1942 = vpop.f32.mrb[0].mxu0
      %v1943 = vadd.f32 %v1702, %v1942
      %v1944 = vpop.f32.mrb[0].mxu0
      %1945 = vmatprep.mubr.f32.mxu0 0.0
      %1946 = vmatmul.mubr.f32.gmra.mrb[0].mxu0 %v1754
      %v1947 = vpop.f32.mrb[0].mxu0
      %v1948 = vadd.f32 %v1702, %v1947
      %v1949 = vpop.f32.mrb[0].mxu0
      %1950 = vmatprep.mubr.f32.mxu0 0.0
      %1951 = vmatmul.mubr.f32.gmra.mrb[0].mxu0 %v1757
      %v1952 = vpop.f32.mrb[0].mxu0
      %v1953 = vadd.f32 %v1702, %v1952
      %v1954 = vpop.f32.mrb[0].mxu0
      %1955 = vmatprep.mubr.f32.mxu0 0.0
      %1956 = vmatmul.mubr.f32.gmra.mrb[0].mxu0 %v1760
      %v1957 = vpop.f32.mrb[0].mxu0
      %v1958 = vadd.f32 %v1702, %v1957
      %v1959 = vpop.f32.mrb[0].mxu0
      %1960 = vmatprep.mubr.f32.mxu0 0.0
      %1961 = vmatmul.mubr.f32.gmra.mrb[0].mxu0 %v1763
      %v1962 = vpop.f32.mrb[0].mxu0
      %v1963 = vadd.f32 %v1702, %v1962
      %v1964 = vpop.f32.mrb[0].mxu0
      %1965 = vmatprep.mubr.f32.mxu0 0.0
      %1966 = vmatmul.mubr.f32.gmra.mrb[0].mxu0 %v1766
      %v1967 = vpop.f32.mrb[0].mxu0
      %v1968 = vadd.f32 %v1702, %v1967
      %v1969 = vpop.f32.mrb[0].mxu0
      %1970 = vmatprep.mubr.f32.mxu0 0.0
      %1971 = vmatmul.mubr.f32.gmra.mrb[0].mxu0 %v1769
      %v1972 = vpop.f32.mrb[0].mxu0
      %v1973 = vadd.f32 %v1702, %v1972
      %v1974 = vpop.f32.mrb[0].mxu0
      %1975 = vmatprep.mubr.f32.mxu0 0.0
      %1976 = vmatmul.mubr.f32.gmra.mrb[0].mxu0 %v1772
      %v1977 = vpop.f32.mrb[0].mxu0
      %v1978 = vadd.f32 %v1702, %v1977
      %v1979 = vpop.f32.mrb[0].mxu0
      %1980 = vmatprep.mubr.f32.mxu0 0.0
      %1981 = vmatmul.mubr.f32.gmra.mrb[0].mxu0 %v1775
      %v1982 = vpop.f32.mrb[0].mxu0
      %v1983 = vadd.f32 %v1702, %v1982
      %v1984 = vpop.f32.mrb[0].mxu0
      %1985 = vmatprep.mubr.f32.mxu0 0.0
      %1986 = vmatmul.mubr.f32.gmra.mrb[0].mxu0 %v1778
      %v1987 = vpop.f32.mrb[0].mxu0
      %v1988 = vadd.f32 %v1702, %v1987
      %v1989 = vpop.f32.mrb[0].mxu0
      %1990 = vmatprep.mubr.f32.mxu0 0.0
      %1991 = vmatmul.mubr.f32.gmra.mrb[0].mxu0 %v1781
      %v1992 = vpop.f32.mrb[0].mxu0
      %v1993 = vadd.f32 %v1702, %v1992
      %v1994 = vpop.f32.mrb[0].mxu0
      %1995 = vmatprep.mubr.f32.mxu0 0.0
      %1996 = vmatmul.mubr.f32.gmra.mrb[0].mxu0 %v1784
      %v1997 = vpop.f32.mrb[0].mxu0
      %v1998 = vadd.f32 %v1702, %v1997
      %v1999 = vpop.f32.mrb[0].mxu0
      %2000 = vmatprep.mubr.f32.mxu0 0.0
      %2001 = vmatmul.mubr.f32.gmra.mrb[0].mxu0 %v1787
      %v2002 = vpop.f32.mrb[0].mxu0
      %v2003 = vadd.f32 %v1702, %v2002
      %v2004 = vpop.f32.mrb[0].mxu0
      %2005 = vmatprep.mubr.f32.mxu0 0.0
      %2006 = vmatmul.mubr.f32.gmra.mrb[0].mxu0 %v1790
      %v2007 = vpop.f32.mrb[0].mxu0
      %v2008 = vadd.f32 %v1702, %v2007
      %v2009 = vpop.f32.mrb[0].mxu0
      %2010 = vmatprep.mubr.f32.mxu0 0.0
      %2011 = vmatmul.mubr.f32.gmra.mrb[0].mxu0 %v1793
      %v2012 = vpop.f32.mrb[0].mxu0
      %v2013 = vadd.f32 %v1702, %v2012
      %v2014 = vpop.f32.mrb[0].mxu0
      %2015 = vmatprep.mubr.f32.mxu0 0.0
      %2016 = vmatmul.mubr.f32.gmra.mrb[0].mxu0 %v1796
      %v2017 = vpop.f32.mrb[0].mxu0
      %v2018 = vadd.f32 %v1702, %v2017
      %v2019 = vpop.f32.mrb[0].mxu0
      %2020 = vmatprep.mubr.f32.mxu0 0.0
      %2021 = vmatmul.mubr.f32.gmra.mrb[0].mxu0 %v1799
      %v2022 = vpop.f32.mrb[0].mxu0
      %v2023 = vadd.f32 %v1702, %v2022
      %v2024 = vpop.f32.mrb[0].mxu0
      %2025 = vdwg.mxu0
      %v2026 = vmax.f32 %v1868, 0.0
      %v2027 = vmax.f32 %v1873, 0.0
      %v2028 = vmax.f32 %v1878, 0.0
      %v2029 = vmax.f32 %v1883, 0.0
      %v2030 = vmax.f32 %v1888, 0.0
      %v2031 = vmax.f32 %v1893, 0.0
      %v2032 = vmax.f32 %v1898, 0.0
      %v2033 = vmax.f32 %v1903, 0.0
      %v2034 = vmax.f32 %v1908, 0.0
      %v2035 = vmax.f32 %v1913, 0.0
      %v2036 = vmax.f32 %v1918, 0.0
      %v2037 = vmax.f32 %v1923, 0.0
      %v2038 = vmax.f32 %v1928, 0.0
      %v2039 = vmax.f32 %v1933, 0.0
      %v2040 = vmax.f32 %v1938, 0.0
      %v2041 = vmax.f32 %v1943, 0.0
      %v2042 = vmax.f32 %v1948, 0.0
      %v2043 = vmax.f32 %v1953, 0.0
      %v2044 = vmax.f32 %v1958, 0.0
      %v2045 = vmax.f32 %v1963, 0.0
      %v2046 = vmax.f32 %v1968, 0.0
      %v2047 = vmax.f32 %v1973, 0.0
      %v2048 = vmax.f32 %v1978, 0.0
      %v2049 = vmax.f32 %v1983, 0.0
      %v2050 = vmax.f32 %v1988, 0.0
      %v2051 = vmax.f32 %v1993, 0.0
      %v2052 = vmax.f32 %v1998, 0.0
      %v2053 = vmax.f32 %v2003, 0.0
      %v2054 = vmax.f32 %v2008, 0.0
      %v2055 = vmax.f32 %v2013, 0.0
      %v2056 = vmax.f32 %v2018, 0.0
      %v2057 = vmax.f32 %v2023, 0.0
      %v2058 = vld [vmem:[%s9] sm:$0xff]
      %v2059 = vld [vmem:[%s9 + $0x8] sm:$0xff]
      %v2060 = vld [vmem:[%s9 + $0x10] sm:$0xff]
      %v2061 = vld [vmem:[%s9 + $0x18] sm:$0xff]
      %v2062 = vld [vmem:[%s9 + $0x20] sm:$0xff]
      %v2063 = vld [vmem:[%s9 + $0x28] sm:$0xff]
      %v2064 = vld [vmem:[%s9 + $0x30] sm:$0xff]
      %v2065 = vld [vmem:[%s9 + $0x38] sm:$0xff]
      %v2066 = vld [vmem:[%s10] sm:$0x1]
      %v2068 = vlaneseq
      %v2069 = vshrl.u32 %v2068, 7
      %v2070 = vsub.s32 0, %v2069
      %v2071 = vrot.slane %v2066, %v2070
      %v2074 = vsel %vm1704, %v2026, 0
      %v2077 = vsel %vm1704, %v2027, 0
      %v2080 = vsel %vm1704, %v2028, 0
      %v2083 = vsel %vm1704, %v2029, 0
      %v2086 = vsel %vm1704, %v2030, 0
      %v2089 = vsel %vm1704, %v2031, 0
      %v2092 = vsel %vm1704, %v2032, 0
      %v2095 = vsel %vm1704, %v2033, 0
      %v2098 = vsel %vm1704, %v2034, 0
      %v2101 = vsel %vm1704, %v2035, 0
      %v2104 = vsel %vm1704, %v2036, 0
      %v2107 = vsel %vm1704, %v2037, 0
      %v2110 = vsel %vm1704, %v2038, 0
      %v2113 = vsel %vm1704, %v2039, 0
      %v2116 = vsel %vm1704, %v2040, 0
      %v2119 = vsel %vm1704, %v2041, 0
      %v2122 = vsel %vm1704, %v2042, 0
      %v2125 = vsel %vm1704, %v2043, 0
      %v2128 = vsel %vm1704, %v2044, 0
      %v2131 = vsel %vm1704, %v2045, 0
      %v2134 = vsel %vm1704, %v2046, 0
      %v2137 = vsel %vm1704, %v2047, 0
      %v2140 = vsel %vm1704, %v2048, 0
      %v2143 = vsel %vm1704, %v2049, 0
      %v2146 = vsel %vm1704, %v2050, 0
      %v2149 = vsel %vm1704, %v2051, 0
      %v2152 = vsel %vm1704, %v2052, 0
      %v2155 = vsel %vm1704, %v2053, 0
      %v2158 = vsel %vm1704, %v2054, 0
      %v2161 = vsel %vm1704, %v2055, 0
      %v2164 = vsel %vm1704, %v2056, 0
      %v2167 = vsel %vm1704, %v2057, 0
      %2169 = vmatprep.subr.mxu0 0.0
      %2170 = vmatpush1.msra.mxu0 %v2058
      %2171 = vmatprep.subr.mxu0 0.0
      %2172 = vmatpush1.msra.mxu0 %v2059
      %2173 = vmatprep.subr.mxu0 0.0
      %2174 = vmatpush1.msra.mxu0 %v2060
      %2175 = vmatprep.subr.mxu0 0.0
      %2176 = vmatpush1.msra.mxu0 %v2061
      %2177 = vmatprep.subr.mxu0 0.0
      %2178 = vmatpush1.msra.mxu0 %v2062
      %2179 = vmatprep.subr.mxu0 0.0
      %2180 = vmatpush1.msra.mxu0 %v2063
      %2181 = vmatprep.subr.mxu0 0.0
      %2182 = vmatpush1.msra.mxu0 %v2064
      %2183 = vmatprep.subr.mxu0 0.0
      %2184 = vmatpush1.msra.mxu0 %v2065
      %2185 = vmatprep.subr.mxu0 0.0
      %2186 = vmatpush1.msra.mxu0 0.0
      %2187 = vmatprep.subr.mxu0 0.0
      %2188 = vmatpush1.msra.mxu0 0.0
      %2189 = vmatprep.subr.mxu0 0.0
      %2190 = vmatpush1.msra.mxu0 0.0
      %2191 = vmatprep.subr.mxu0 0.0
      %2192 = vmatpush1.msra.mxu0 0.0
      %2193 = vmatprep.subr.mxu0 0.0
      %2194 = vmatpush1.msra.mxu0 0.0
      %2195 = vmatprep.subr.mxu0 0.0
      %2196 = vmatpush1.msra.mxu0 0.0
      %2197 = vmatprep.subr.mxu0 0.0
      %2198 = vmatpush1.msra.mxu0 0.0
      %2199 = vmatprep.subr.mxu0 0.0
      %2200 = vmatpush1.msra.mxu0 0.0
      %2201 = vmatprep.subr.mxu0 0.0
      %2202 = vmatpush1.msra.mxu0 0.0
      %2203 = vmatprep.subr.mxu0 0.0
      %2204 = vmatpush1.msra.mxu0 0.0
      %2205 = vmatprep.subr.mxu0 0.0
      %2206 = vmatpush1.msra.mxu0 0.0
      %2207 = vmatprep.subr.mxu0 0.0
      %2208 = vmatpush1.msra.mxu0 0.0
      %2209 = vmatprep.subr.mxu0 0.0
      %2210 = vmatpush1.msra.mxu0 0.0
      %2211 = vmatprep.subr.mxu0 0.0
      %2212 = vmatpush1.msra.mxu0 0.0
      %2213 = vmatprep.subr.mxu0 0.0
      %2214 = vmatpush1.msra.mxu0 0.0
      %2215 = vmatprep.subr.mxu0 0.0
      %2216 = vmatpush1.msra.mxu0 0.0
      %2217 = vmatprep.subr.mxu0 0.0
      %2218 = vmatpush1.msra.mxu0 0.0
      %2219 = vmatprep.subr.mxu0 0.0
      %2220 = vmatpush1.msra.mxu0 0.0
      %2221 = vmatprep.subr.mxu0 0.0
      %2222 = vmatpush1.msra.mxu0 0.0
      %2223 = vmatprep.subr.mxu0 0.0
      %2224 = vmatpush1.msra.mxu0 0.0
      %2225 = vmatprep.subr.mxu0 0.0
      %2226 = vmatpush1.msra.mxu0 0.0
      %2227 = vmatprep.subr.mxu0 0.0
      %2228 = vmatpush1.msra.mxu0 0.0
      %2229 = vmatprep.subr.mxu0 0.0
      %2230 = vmatpush1.msra.mxu0 0.0
      %2231 = vmatprep.subr.mxu0 0.0
      %2232 = vmatpush1.msra.mxu0 0.0
      %2233 = vmatprep.mubr.f32.mxu0 0.0
      %2234 = vmatmul.mubr.f32.gmra.mrb[0].mxu0 %v2074
      %v2235 = vpop.f32.mrb[0].mxu0
      %v2236 = vadd.f32 %v2071, %v2235
      %v2237 = vpop.f32.mrb[0].mxu0
      %2238 = vmatprep.mubr.f32.mxu0 0.0
      %2239 = vmatmul.mubr.f32.gmra.mrb[0].mxu0 %v2077
      %v2240 = vpop.f32.mrb[0].mxu0
      %v2241 = vadd.f32 %v2071, %v2240
      %v2242 = vpop.f32.mrb[0].mxu0
      %2243 = vmatprep.mubr.f32.mxu0 0.0
      %2244 = vmatmul.mubr.f32.gmra.mrb[0].mxu0 %v2080
      %v2245 = vpop.f32.mrb[0].mxu0
      %v2246 = vadd.f32 %v2071, %v2245
      %v2247 = vpop.f32.mrb[0].mxu0
      %2248 = vmatprep.mubr.f32.mxu0 0.0
      %2249 = vmatmul.mubr.f32.gmra.mrb[0].mxu0 %v2083
      %v2250 = vpop.f32.mrb[0].mxu0
      %v2251 = vadd.f32 %v2071, %v2250
      %v2252 = vpop.f32.mrb[0].mxu0
      %2253 = vmatprep.mubr.f32.mxu0 0.0
      %2254 = vmatmul.mubr.f32.gmra.mrb[0].mxu0 %v2086
      %v2255 = vpop.f32.mrb[0].mxu0
      %v2256 = vadd.f32 %v2071, %v2255
      %v2257 = vpop.f32.mrb[0].mxu0
      %2258 = vmatprep.mubr.f32.mxu0 0.0
      %2259 = vmatmul.mubr.f32.gmra.mrb[0].mxu0 %v2089
      %v2260 = vpop.f32.mrb[0].mxu0
      %v2261 = vadd.f32 %v2071, %v2260
      %v2262 = vpop.f32.mrb[0].mxu0
      %2263 = vmatprep.mubr.f32.mxu0 0.0
      %2264 = vmatmul.mubr.f32.gmra.mrb[0].mxu0 %v2092
      %v2265 = vpop.f32.mrb[0].mxu0
      %v2266 = vadd.f32 %v2071, %v2265
      %v2267 = vpop.f32.mrb[0].mxu0
      %2268 = vmatprep.mubr.f32.mxu0 0.0
      %2269 = vmatmul.mubr.f32.gmra.mrb[0].mxu0 %v2095
      %v2270 = vpop.f32.mrb[0].mxu0
      %v2271 = vadd.f32 %v2071, %v2270
      %v2272 = vpop.f32.mrb[0].mxu0
      %2273 = vmatprep.mubr.f32.mxu0 0.0
      %2274 = vmatmul.mubr.f32.gmra.mrb[0].mxu0 %v2098
      %v2275 = vpop.f32.mrb[0].mxu0
      %v2276 = vadd.f32 %v2071, %v2275
      %v2277 = vpop.f32.mrb[0].mxu0
      %2278 = vmatprep.mubr.f32.mxu0 0.0
      %2279 = vmatmul.mubr.f32.gmra.mrb[0].mxu0 %v2101
      %v2280 = vpop.f32.mrb[0].mxu0
      %v2281 = vadd.f32 %v2071, %v2280
      %v2282 = vpop.f32.mrb[0].mxu0
      %2283 = vmatprep.mubr.f32.mxu0 0.0
      %2284 = vmatmul.mubr.f32.gmra.mrb[0].mxu0 %v2104
      %v2285 = vpop.f32.mrb[0].mxu0
      %v2286 = vadd.f32 %v2071, %v2285
      %v2287 = vpop.f32.mrb[0].mxu0
      %2288 = vmatprep.mubr.f32.mxu0 0.0
      %2289 = vmatmul.mubr.f32.gmra.mrb[0].mxu0 %v2107
      %v2290 = vpop.f32.mrb[0].mxu0
      %v2291 = vadd.f32 %v2071, %v2290
      %v2292 = vpop.f32.mrb[0].mxu0
      %2293 = vmatprep.mubr.f32.mxu0 0.0
      %2294 = vmatmul.mubr.f32.gmra.mrb[0].mxu0 %v2110
      %v2295 = vpop.f32.mrb[0].mxu0
      %v2296 = vadd.f32 %v2071, %v2295
      %v2297 = vpop.f32.mrb[0].mxu0
      %2298 = vmatprep.mubr.f32.mxu0 0.0
      %2299 = vmatmul.mubr.f32.gmra.mrb[0].mxu0 %v2113
      %v2300 = vpop.f32.mrb[0].mxu0
      %v2301 = vadd.f32 %v2071, %v2300
      %v2302 = vpop.f32.mrb[0].mxu0
      %2303 = vmatprep.mubr.f32.mxu0 0.0
      %2304 = vmatmul.mubr.f32.gmra.mrb[0].mxu0 %v2116
      %v2305 = vpop.f32.mrb[0].mxu0
      %v2306 = vadd.f32 %v2071, %v2305
      %v2307 = vpop.f32.mrb[0].mxu0
      %2308 = vmatprep.mubr.f32.mxu0 0.0
      %2309 = vmatmul.mubr.f32.gmra.mrb[0].mxu0 %v2119
      %v2310 = vpop.f32.mrb[0].mxu0
      %v2311 = vadd.f32 %v2071, %v2310
      %v2312 = vpop.f32.mrb[0].mxu0
      %2313 = vmatprep.mubr.f32.mxu0 0.0
      %2314 = vmatmul.mubr.f32.gmra.mrb[0].mxu0 %v2122
      %v2315 = vpop.f32.mrb[0].mxu0
      %v2316 = vadd.f32 %v2071, %v2315
      %v2317 = vpop.f32.mrb[0].mxu0
      %2318 = vmatprep.mubr.f32.mxu0 0.0
      %2319 = vmatmul.mubr.f32.gmra.mrb[0].mxu0 %v2125
      %v2320 = vpop.f32.mrb[0].mxu0
      %v2321 = vadd.f32 %v2071, %v2320
      %v2322 = vpop.f32.mrb[0].mxu0
      %2323 = vmatprep.mubr.f32.mxu0 0.0
      %2324 = vmatmul.mubr.f32.gmra.mrb[0].mxu0 %v2128
      %v2325 = vpop.f32.mrb[0].mxu0
      %v2326 = vadd.f32 %v2071, %v2325
      %v2327 = vpop.f32.mrb[0].mxu0
      %2328 = vmatprep.mubr.f32.mxu0 0.0
      %2329 = vmatmul.mubr.f32.gmra.mrb[0].mxu0 %v2131
      %v2330 = vpop.f32.mrb[0].mxu0
      %v2331 = vadd.f32 %v2071, %v2330
      %v2332 = vpop.f32.mrb[0].mxu0
      %2333 = vmatprep.mubr.f32.mxu0 0.0
      %2334 = vmatmul.mubr.f32.gmra.mrb[0].mxu0 %v2134
      %v2335 = vpop.f32.mrb[0].mxu0
      %v2336 = vadd.f32 %v2071, %v2335
      %v2337 = vpop.f32.mrb[0].mxu0
      %2338 = vmatprep.mubr.f32.mxu0 0.0
      %2339 = vmatmul.mubr.f32.gmra.mrb[0].mxu0 %v2137
      %v2340 = vpop.f32.mrb[0].mxu0
      %v2341 = vadd.f32 %v2071, %v2340
      %v2342 = vpop.f32.mrb[0].mxu0
      %2343 = vmatprep.mubr.f32.mxu0 0.0
      %2344 = vmatmul.mubr.f32.gmra.mrb[0].mxu0 %v2140
      %v2345 = vpop.f32.mrb[0].mxu0
      %v2346 = vadd.f32 %v2071, %v2345
      %v2347 = vpop.f32.mrb[0].mxu0
      %2348 = vmatprep.mubr.f32.mxu0 0.0
      %2349 = vmatmul.mubr.f32.gmra.mrb[0].mxu0 %v2143
      %v2350 = vpop.f32.mrb[0].mxu0
      %v2351 = vadd.f32 %v2071, %v2350
      %v2352 = vpop.f32.mrb[0].mxu0
      %2353 = vmatprep.mubr.f32.mxu0 0.0
      %2354 = vmatmul.mubr.f32.gmra.mrb[0].mxu0 %v2146
      %v2355 = vpop.f32.mrb[0].mxu0
      %v2356 = vadd.f32 %v2071, %v2355
      %v2357 = vpop.f32.mrb[0].mxu0
      %2358 = vmatprep.mubr.f32.mxu0 0.0
      %2359 = vmatmul.mubr.f32.gmra.mrb[0].mxu0 %v2149
      %v2360 = vpop.f32.mrb[0].mxu0
      %v2361 = vadd.f32 %v2071, %v2360
      %v2362 = vpop.f32.mrb[0].mxu0
      %2363 = vmatprep.mubr.f32.mxu0 0.0
      %2364 = vmatmul.mubr.f32.gmra.mrb[0].mxu0 %v2152
      %v2365 = vpop.f32.mrb[0].mxu0
      %v2366 = vadd.f32 %v2071, %v2365
      %v2367 = vpop.f32.mrb[0].mxu0
      %2368 = vmatprep.mubr.f32.mxu0 0.0
      %2369 = vmatmul.mubr.f32.gmra.mrb[0].mxu0 %v2155
      %v2370 = vpop.f32.mrb[0].mxu0
      %v2371 = vadd.f32 %v2071, %v2370
      %v2372 = vpop.f32.mrb[0].mxu0
      %2373 = vmatprep.mubr.f32.mxu0 0.0
      %2374 = vmatmul.mubr.f32.gmra.mrb[0].mxu0 %v2158
      %v2375 = vpop.f32.mrb[0].mxu0
      %v2376 = vadd.f32 %v2071, %v2375
      %v2377 = vpop.f32.mrb[0].mxu0
      %2378 = vmatprep.mubr.f32.mxu0 0.0
      %2379 = vmatmul.mubr.f32.gmra.mrb[0].mxu0 %v2161
      %v2380 = vpop.f32.mrb[0].mxu0
      %v2381 = vadd.f32 %v2071, %v2380
      %v2382 = vpop.f32.mrb[0].mxu0
      %2383 = vmatprep.mubr.f32.mxu0 0.0
      %2384 = vmatmul.mubr.f32.gmra.mrb[0].mxu0 %v2164
      %v2385 = vpop.f32.mrb[0].mxu0
      %v2386 = vadd.f32 %v2071, %v2385
      %v2387 = vpop.f32.mrb[0].mxu0
      %2388 = vmatprep.mubr.f32.mxu0 0.0
      %2389 = vmatmul.mubr.f32.gmra.mrb[0].mxu0 %v2167
      %v2390 = vpop.f32.mrb[0].mxu0
      %v2391 = vadd.f32 %v2071, %v2390
      %v2392 = vpop.f32.mrb[0].mxu0
      %2393 = vdwg.mxu0
      %v2394 = vxor.u32 %v2236, 2147483648
      %v2395 = vxor.u32 %v2241, 2147483648
      %v2396 = vxor.u32 %v2246, 2147483648
      %v2397 = vxor.u32 %v2251, 2147483648
      %v2398 = vxor.u32 %v2256, 2147483648
      %v2399 = vxor.u32 %v2261, 2147483648
      %v2400 = vxor.u32 %v2266, 2147483648
      %v2401 = vxor.u32 %v2271, 2147483648
      %v2402 = vxor.u32 %v2276, 2147483648
      %v2403 = vxor.u32 %v2281, 2147483648
      %v2404 = vxor.u32 %v2286, 2147483648
      %v2405 = vxor.u32 %v2291, 2147483648
      %v2406 = vxor.u32 %v2296, 2147483648
      %v2407 = vxor.u32 %v2301, 2147483648
      %v2408 = vxor.u32 %v2306, 2147483648
      %v2409 = vxor.u32 %v2311, 2147483648
      %v2410 = vxor.u32 %v2316, 2147483648
      %v2411 = vxor.u32 %v2321, 2147483648
      %v2412 = vxor.u32 %v2326, 2147483648
      %v2413 = vxor.u32 %v2331, 2147483648
      %v2414 = vxor.u32 %v2336, 2147483648
      %v2415 = vxor.u32 %v2341, 2147483648
      %v2416 = vxor.u32 %v2346, 2147483648
      %v2417 = vxor.u32 %v2351, 2147483648
      %v2418 = vxor.u32 %v2356, 2147483648
      %v2419 = vxor.u32 %v2361, 2147483648
      %v2420 = vxor.u32 %v2366, 2147483648
      %v2421 = vxor.u32 %v2371, 2147483648
      %v2422 = vxor.u32 %v2376, 2147483648
      %v2423 = vxor.u32 %v2381, 2147483648
      %v2424 = vxor.u32 %v2386, 2147483648
      %v2425 = vxor.u32 %v2391, 2147483648
      %v2426 = vmul.f32 %v2394, 1.442695
      %v2427 = vpow.pop %v2426
      %v2428 = vmul.f32 %v2395, 1.442695
      %v2429 = vpow.pop %v2428
      %v2430 = vmul.f32 %v2396, 1.442695
      %v2431 = vpow.pop %v2430
      %v2432 = vmul.f32 %v2397, 1.442695
      %v2433 = vpow.pop %v2432
      %v2434 = vmul.f32 %v2398, 1.442695
      %v2435 = vpow.pop %v2434
      %v2436 = vmul.f32 %v2399, 1.442695
      %v2437 = vpow.pop %v2436
      %v2438 = vmul.f32 %v2400, 1.442695
      %v2439 = vpow.pop %v2438
      %v2440 = vmul.f32 %v2401, 1.442695
      %v2441 = vpow.pop %v2440
      %v2442 = vmul.f32 %v2402, 1.442695
      %v2443 = vpow.pop %v2442
      %v2444 = vmul.f32 %v2403, 1.442695
      %v2445 = vpow.pop %v2444
      %v2446 = vmul.f32 %v2404, 1.442695
      %v2447 = vpow.pop %v2446
      %v2448 = vmul.f32 %v2405, 1.442695
      %v2449 = vpow.pop %v2448
      %v2450 = vmul.f32 %v2406, 1.442695
      %v2451 = vpow.pop %v2450
      %v2452 = vmul.f32 %v2407, 1.442695
      %v2453 = vpow.pop %v2452
      %v2454 = vmul.f32 %v2408, 1.442695
      %v2455 = vpow.pop %v2454
      %v2456 = vmul.f32 %v2409, 1.442695
      %v2457 = vpow.pop %v2456
      %v2458 = vmul.f32 %v2410, 1.442695
      %v2459 = vpow.pop %v2458
      %v2460 = vmul.f32 %v2411, 1.442695
      %v2461 = vpow.pop %v2460
      %v2462 = vmul.f32 %v2412, 1.442695
      %v2463 = vpow.pop %v2462
      %v2464 = vmul.f32 %v2413, 1.442695
      %v2465 = vpow.pop %v2464
      %v2466 = vmul.f32 %v2414, 1.442695
      %v2467 = vpow.pop %v2466
      %v2468 = vmul.f32 %v2415, 1.442695
      %v2469 = vpow.pop %v2468
      %v2470 = vmul.f32 %v2416, 1.442695
      %v2471 = vpow.pop %v2470
      %v2472 = vmul.f32 %v2417, 1.442695
      %v2473 = vpow.pop %v2472
      %v2474 = vmul.f32 %v2418, 1.442695
      %v2475 = vpow.pop %v2474
      %v2476 = vmul.f32 %v2419, 1.442695
      %v2477 = vpow.pop %v2476
      %v2478 = vmul.f32 %v2420, 1.442695
      %v2479 = vpow.pop %v2478
      %v2480 = vmul.f32 %v2421, 1.442695
      %v2481 = vpow.pop %v2480
      %v2482 = vmul.f32 %v2422, 1.442695
      %v2483 = vpow.pop %v2482
      %v2484 = vmul.f32 %v2423, 1.442695
      %v2485 = vpow.pop %v2484
      %v2486 = vmul.f32 %v2424, 1.442695
      %v2487 = vpow.pop %v2486
      %v2488 = vmul.f32 %v2425, 1.442695
      %v2489 = vpow.pop %v2488
      %v2490 = vadd.f32 %v2427, 1.0
      %v2491 = vadd.f32 %v2429, 1.0
      %v2492 = vadd.f32 %v2431, 1.0
      %v2493 = vadd.f32 %v2433, 1.0
      %v2494 = vadd.f32 %v2435, 1.0
      %v2495 = vadd.f32 %v2437, 1.0
      %v2496 = vadd.f32 %v2439, 1.0
      %v2497 = vadd.f32 %v2441, 1.0
      %v2498 = vadd.f32 %v2443, 1.0
      %v2499 = vadd.f32 %v2445, 1.0
      %v2500 = vadd.f32 %v2447, 1.0
      %v2501 = vadd.f32 %v2449, 1.0
      %v2502 = vadd.f32 %v2451, 1.0
      %v2503 = vadd.f32 %v2453, 1.0
      %v2504 = vadd.f32 %v2455, 1.0
      %v2505 = vadd.f32 %v2457, 1.0
      %v2506 = vadd.f32 %v2459, 1.0
      %v2507 = vadd.f32 %v2461, 1.0
      %v2508 = vadd.f32 %v2463, 1.0
      %v2509 = vadd.f32 %v2465, 1.0
      %v2510 = vadd.f32 %v2467, 1.0
      %v2511 = vadd.f32 %v2469, 1.0
      %v2512 = vadd.f32 %v2471, 1.0
      %v2513 = vadd.f32 %v2473, 1.0
      %v2514 = vadd.f32 %v2475, 1.0
      %v2515 = vadd.f32 %v2477, 1.0
      %v2516 = vadd.f32 %v2479, 1.0
      %v2517 = vadd.f32 %v2481, 1.0
      %v2518 = vadd.f32 %v2483, 1.0
      %v2519 = vadd.f32 %v2485, 1.0
      %v2520 = vadd.f32 %v2487, 1.0
      %v2521 = vadd.f32 %v2489, 1.0
      %v2522 = vrcp.pop %v2490
      %v2523 = vmul.f32 1.0, %v2522
      %v2524 = vrcp.pop %v2491
      %v2525 = vmul.f32 1.0, %v2524
      %v2526 = vrcp.pop %v2492
      %v2527 = vmul.f32 1.0, %v2526
      %v2528 = vrcp.pop %v2493
      %v2529 = vmul.f32 1.0, %v2528
      %v2530 = vrcp.pop %v2494
      %v2531 = vmul.f32 1.0, %v2530
      %v2532 = vrcp.pop %v2495
      %v2533 = vmul.f32 1.0, %v2532
      %v2534 = vrcp.pop %v2496
      %v2535 = vmul.f32 1.0, %v2534
      %v2536 = vrcp.pop %v2497
      %v2537 = vmul.f32 1.0, %v2536
      %v2538 = vrcp.pop %v2498
      %v2539 = vmul.f32 1.0, %v2538
      %v2540 = vrcp.pop %v2499
      %v2541 = vmul.f32 1.0, %v2540
      %v2542 = vrcp.pop %v2500
      %v2543 = vmul.f32 1.0, %v2542
      %v2544 = vrcp.pop %v2501
      %v2545 = vmul.f32 1.0, %v2544
      %v2546 = vrcp.pop %v2502
      %v2547 = vmul.f32 1.0, %v2546
      %v2548 = vrcp.pop %v2503
      %v2549 = vmul.f32 1.0, %v2548
      %v2550 = vrcp.pop %v2504
      %v2551 = vmul.f32 1.0, %v2550
      %v2552 = vrcp.pop %v2505
      %v2553 = vmul.f32 1.0, %v2552
      %v2554 = vrcp.pop %v2506
      %v2555 = vmul.f32 1.0, %v2554
      %v2556 = vrcp.pop %v2507
      %v2557 = vmul.f32 1.0, %v2556
      %v2558 = vrcp.pop %v2508
      %v2559 = vmul.f32 1.0, %v2558
      %v2560 = vrcp.pop %v2509
      %v2561 = vmul.f32 1.0, %v2560
      %v2562 = vrcp.pop %v2510
      %v2563 = vmul.f32 1.0, %v2562
      %v2564 = vrcp.pop %v2511
      %v2565 = vmul.f32 1.0, %v2564
      %v2566 = vrcp.pop %v2512
      %v2567 = vmul.f32 1.0, %v2566
      %v2568 = vrcp.pop %v2513
      %v2569 = vmul.f32 1.0, %v2568
      %v2570 = vrcp.pop %v2514
      %v2571 = vmul.f32 1.0, %v2570
      %v2572 = vrcp.pop %v2515
      %v2573 = vmul.f32 1.0, %v2572
      %v2574 = vrcp.pop %v2516
      %v2575 = vmul.f32 1.0, %v2574
      %v2576 = vrcp.pop %v2517
      %v2577 = vmul.f32 1.0, %v2576
      %v2578 = vrcp.pop %v2518
      %v2579 = vmul.f32 1.0, %v2578
      %v2580 = vrcp.pop %v2519
      %v2581 = vmul.f32 1.0, %v2580
      %v2582 = vrcp.pop %v2520
      %v2583 = vmul.f32 1.0, %v2582
      %v2584 = vrcp.pop %v2521
      %v2585 = vmul.f32 1.0, %v2584
      %2586 = vst.msk [vmem:[%s510] sm:$0xff] %vm613, %v2523
      %2587 = vst.msk [vmem:[%s510 + $0x8] sm:$0xff] %vm613, %v2525
      %2588 = vst.msk [vmem:[%s510 + $0x10] sm:$0xff] %vm613, %v2527
      %2589 = vst.msk [vmem:[%s510 + $0x18] sm:$0xff] %vm613, %v2529
      %2590 = vst.msk [vmem:[%s510 + $0x20] sm:$0xff] %vm613, %v2531
      %2591 = vst.msk [vmem:[%s510 + $0x28] sm:$0xff] %vm613, %v2533
      %2592 = vst.msk [vmem:[%s510 + $0x30] sm:$0xff] %vm613, %v2535
      %2593 = vst.msk [vmem:[%s510 + $0x38] sm:$0xff] %vm613, %v2537
      %2594 = vst.msk [vmem:[%s510 + $0x40] sm:$0xff] %vm613, %v2539
      %2595 = vst.msk [vmem:[%s510 + $0x48] sm:$0xff] %vm613, %v2541
      %2596 = vst.msk [vmem:[%s510 + $0x50] sm:$0xff] %vm613, %v2543
      %2597 = vst.msk [vmem:[%s510 + $0x58] sm:$0xff] %vm613, %v2545
      %2598 = vst.msk [vmem:[%s510 + $0x60] sm:$0xff] %vm613, %v2547
      %2599 = vst.msk [vmem:[%s510 + $0x68] sm:$0xff] %vm613, %v2549
      %2600 = vst.msk [vmem:[%s510 + $0x70] sm:$0xff] %vm613, %v2551
      %2601 = vst.msk [vmem:[%s510 + $0x78] sm:$0xff] %vm613, %v2553
      %2602 = vst.msk [vmem:[%s510 + $0x80] sm:$0xff] %vm613, %v2555
      %2603 = vst.msk [vmem:[%s510 + $0x88] sm:$0xff] %vm613, %v2557
      %2604 = vst.msk [vmem:[%s510 + $0x90] sm:$0xff] %vm613, %v2559
      %2605 = vst.msk [vmem:[%s510 + $0x98] sm:$0xff] %vm613, %v2561
      %2606 = vst.msk [vmem:[%s510 + $0xa0] sm:$0xff] %vm613, %v2563
      %2607 = vst.msk [vmem:[%s510 + $0xa8] sm:$0xff] %vm613, %v2565
      %2608 = vst.msk [vmem:[%s510 + $0xb0] sm:$0xff] %vm613, %v2567
      %2609 = vst.msk [vmem:[%s510 + $0xb8] sm:$0xff] %vm613, %v2569
      %2610 = vst.msk [vmem:[%s510 + $0xc0] sm:$0xff] %vm613, %v2571
      %2611 = vst.msk [vmem:[%s510 + $0xc8] sm:$0xff] %vm613, %v2573
      %2612 = vst.msk [vmem:[%s510 + $0xd0] sm:$0xff] %vm613, %v2575
      %2613 = vst.msk [vmem:[%s510 + $0xd8] sm:$0xff] %vm613, %v2577
      %2614 = vst.msk [vmem:[%s510 + $0xe0] sm:$0xff] %vm613, %v2579
      %2615 = vst.msk [vmem:[%s510 + $0xe8] sm:$0xff] %vm613, %v2581
      %2616 = vst.msk [vmem:[%s510 + $0xf0] sm:$0xff] %vm613, %v2583
      %2617 = vst.msk [vmem:[%s510 + $0xf8] sm:$0xff] %vm613, %v2585
      %s2618 = smul.u32 32, %s27
      %p2619 = scmp.lt.s32.totalorder %s26, 1
      %s2620 = scalar_select %p2619, %s26, 1
      %p2621 = scmp.lt.s32.totalorder %s2618, 63
      %s2622 = scalar_select %p2621, %s2618, 63
      %s2623 = smul.addr %s2620, 64
      %s2624 = sadd.s32 %s2622, %s2623
      %s2625 = smul.addr %s2624, 8
      %s2626 = scalar_lea.vmem %s11, %s2625
      // Predicated region
      $region65: #{rendering_net_forward.1} parent=63 // pred_check
        %p2627 = pneg %p311
      $region66: #{rendering_net_forward.1} parent=63 // pred_check_branch
        %2629 = sbr.rel (%p2627) target = $region68
      $region67: #{rendering_net_forward.1} parent=63 // pred_region
        %s2630 = smul.u32 32, %s27
      $region68: #{rendering_net_forward.1} parent=63 // pred_fallthru
        _
    $region64: #{rendering_net_forward.1} parent=5 // pred_fallthru
      _
    %p2631 = scmp.le.s32.totalorder 2, %s17
    // Predicated region
    $region69: #{rendering_net_forward.1} parent=5 // pred_check
      %p2632 = pneg %p2631
    $region70: #{rendering_net_forward.1} parent=5 // pred_check_branch
      %2634 = sbr.rel (%p2632) target = $region72
    $region71: #{rendering_net_forward.1} parent=5 // pred_region
      %s2635 = ssub.s32 %s17, 2
      // Predicated region
      $region73: #{rendering_net_forward.1} parent=71 // pred_check
        %p2636 = pneg %p317
      $region74: #{rendering_net_forward.1} parent=71 // pred_check_branch
        %2638 = sbr.rel (%p2636) target = $region76
      $region75: #{rendering_net_forward.1} parent=71 // pred_region
        %s2639 = smul.u32 32, %s29
        %p2640 = scmp.lt.s32.totalorder %s28, 1
        %s2641 = scalar_select %p2640, %s28, 1
        %p2642 = scmp.lt.s32.totalorder %s2639, 63
        %s2643 = scalar_select %p2642, %s2639, 63
        %s2644 = smul.addr %s2641, 64
        %s2645 = sadd.s32 %s2643, %s2644
        %s2646 = smul.addr %s2645, 8
        %s2647 = scalar_lea.vmem %s11, %s2646
      $region76: #{rendering_net_forward.1} parent=71 // pred_fallthru
        _
    $region72: #{rendering_net_forward.1} parent=5 // pred_fallthru
      _
  $region6: #{rendering_net_forward.1} parent=0 // loop_footer
    %s21 = sadd.s32 1, %s17
  $region7: #{rendering_net_forward.1} parent=0 // loop_footer_branch
    %16 = sbr.rel target = $region3
  $region8: #{rendering_net_forward.1} parent=0 // loop_exit
    _

</llo_original>
